<compile_context>
chip_gen: v7x
topology: tpu7x:2x2x1
jax: 0.10.0
libtpu: 0.0.40
codegen_flags: <defaults>
</compile_context>

<pallas_src>
import numpy as np
import jax
import jax.numpy as jnp
from jax.experimental import pallas as pl
from jax.experimental.pallas import tpu as pltpu

SUB = 128  # lane-group / sub-block width (also halo width)


# ----------------------------------------------------------------------------
# Filter parameter setup ("__init__"-equivalent glue, host-side numpy)
# ----------------------------------------------------------------------------
def make_bandpass_taps(sample_rate: float, min_freq: float, max_freq: float,
                       num_taps: int = 33) -> np.ndarray:
    """Windowed-sinc band-pass FIR taps: lowpass(max) - lowpass(min), Hann window."""
    assert num_taps % 2 == 1
    f_lo = min_freq / sample_rate          # normalized cutoff (cycles / sample)
    f_hi = max_freq / sample_rate
    n = np.arange(num_taps, dtype=np.float64) - (num_taps - 1) / 2.0
    h_hi = 2.0 * f_hi * np.sinc(2.0 * f_hi * n)
    h_lo = 2.0 * f_lo * np.sinc(2.0 * f_lo * n)
    window = np.hanning(num_taps)
    taps = (h_hi - h_lo) * window
    return np.asarray(taps, dtype=np.float32)


def _round_up(x: int, m: int) -> int:
    return (x + m - 1) // m * m


def _make_conv_matrices(taps: np.ndarray, block: int, halo: int):
    """Banded matrices so that  out_sub = x_sub @ W0 + next_sub @ W1.

    out[t] = sum_k taps[k] * xpad[s + t + k]   for t in [0, block), s = sub-block offset
    x_sub  = xpad[:, s : s+block],  next_sub = xpad[:, s+block : s+block+halo]
    """
    K = int(taps.shape[0])
    assert K - 1 <= halo
    W0 = np.zeros((block, block), np.float32)
    W1 = np.zeros((halo, block), np.float32)
    t = np.arange(block)
    for k in range(K):
        i = t + k
        in0 = i < block
        W0[i[in0], t[in0]] = taps[k]
        in1 = ~in0
        W1[i[in1] - block, t[in1]] = taps[k]
    return W0, W1


# ----------------------------------------------------------------------------
# Pallas kernel: FIR "same" convolution as banded 128x128 MXU matmuls
# ----------------------------------------------------------------------------
def _fir_kernel(cur_ref, halo_ref, w0_ref, w1_ref, out_ref):
    # cur_ref : VMEM f32[Rt, Tt]   current time tile of the zero-padded signal
    # halo_ref: VMEM f32[Rt, 128]  first 128 columns of the next tile (K-1 used)
    # w0_ref  : VMEM f32[128,128]  banded taps matrix (main part)   -- resident (const index)
    # w1_ref  : VMEM f32[128,128]  banded taps matrix (halo tail)   -- resident (const index)
    # out_ref : VMEM f32[Rt, Tt]
    w0 = w0_ref[...]
    w1 = w1_ref[...]
    nj = cur_ref.shape[1] // SUB
    for j in range(nj):                              # static unroll, small trip count
        x0 = cur_ref[:, j * SUB:(j + 1) * SUB]
        if j + 1 < nj:
            x1 = cur_ref[:, (j + 1) * SUB:(j + 2) * SUB]
        else:
            x1 = halo_ref[...]
        y = jnp.dot(x0, w0, preferred_element_type=jnp.float32,
                    precision=jax.lax.Precision.HIGHEST)
        y = y + jnp.dot(x1, w1, preferred_element_type=jnp.float32,
                        precision=jax.lax.Precision.HIGHEST)
        out_ref[:, j * SUB:(j + 1) * SUB] = y.astype(out_ref.dtype)


def fir_bandpass_rows(rows: jnp.ndarray, taps_np: np.ndarray,
                      *, max_time_tile: int = 1024) -> jnp.ndarray:
    """Apply the FIR band-pass filter along the last axis of rows=(R, T)."""
    R, T = rows.shape
    K = int(taps_np.shape[0])
    assert K - 1 <= SUB, "filter longer than halo width not supported"
    pad_l = (K - 1) // 2

    # ---- tile-size choice (lane-dense, sublane-aligned, VMEM-friendly) ----
    assert max_time_tile % SUB == 0
    Tt = min(_round_up(T, SUB), max_time_tile)      # output samples per time tile
    num_tt = pl.cdiv(T, Tt)
    T_pad = num_tt * Tt

    R_pad = _round_up(R, 8)
    Rt = next(r for r in (256, 128, 64, 32, 16, 8) if R_pad % r == 0)
    num_rt = R_pad // Rt

    # Single padded buffer (zero "same" padding + alignment + halo slack).
    # xpad column i holds x[i - pad_l] (zero outside the valid range).
    xpad = jnp.pad(rows.astype(jnp.float32),
                   ((0, R_pad - R), (pad_l, (T_pad - T) + (SUB - pad_l))))

    W0_np, W1_np = _make_conv_matrices(taps_np, SUB, SUB)
    W0 = jnp.asarray(W0_np)
    W1 = jnp.asarray(W1_np)

    subs_per_tile = Tt // SUB

    out = pl.pallas_call(
        _fir_kernel,
        out_shape=jax.ShapeDtypeStruct((R_pad, T_pad), jnp.float32),
        grid=(num_rt, num_tt),
        in_specs=[
            # current time tile of the padded signal
            pl.BlockSpec((Rt, Tt), lambda i, j: (i, j)),
            # halo: first 128 columns of the *next* tile (same array, narrow blocks)
            pl.BlockSpec((Rt, SUB), lambda i, j: (i, (j + 1) * subs_per_tile)),
            # constant taps matrices (block index never changes -> fetched once)
            pl.BlockSpec((SUB, SUB), lambda i, j: (0, 0)),
            pl.BlockSpec((SUB, SUB), lambda i, j: (0, 0)),
        ],
        out_specs=pl.BlockSpec((Rt, Tt), lambda i, j: (i, j)),
        compiler_params=pltpu.CompilerParams(
            dimension_semantics=("parallel", "parallel")),
    )(xpad, xpad, W0, W1)

    return out[:R, :T]


def bp_filter(x: jnp.ndarray, taps_np: np.ndarray) -> jnp.ndarray:
    """Apply the FIR band-pass filter along the time axis of x=(B, C, T)."""
    B, C, T = x.shape
    out = fir_bandpass_rows(x.reshape(B * C, T), taps_np)
    return out.reshape(B, C, T)


# ----------------------------------------------------------------------------
# Band_mask module equivalent
# ----------------------------------------------------------------------------
class BandMask:
    # TODO(synk): the reference BP_filter implementation is not given in the spec;
    # a 33-tap Hann-windowed-sinc band-pass FIR ("same" padding) is used here.
    def __init__(self, sample_rate: float, min_freq: float, max_freq: float,
                 num_taps: int = 33):
        self.sample_rate = sample_rate
        self.taps = make_bandpass_taps(sample_rate, min_freq, max_freq, num_taps)

    def forward(self, noisy_track: jnp.ndarray, clean_track: jnp.ndarray):
        if noisy_track.shape == clean_track.shape:
            # Fuse both tracks into one kernel launch (halves launch overhead,
            # doubles sublane occupancy, longer grid to hide DMA latency).
            B, C, T = noisy_track.shape
            rows = jnp.concatenate(
                [noisy_track.reshape(B * C, T), clean_track.reshape(B * C, T)],
                axis=0)
            out = fir_bandpass_rows(rows, self.taps)
            noisy_f = out[:B * C].reshape(B, C, T)
            clean_f = out[B * C:].reshape(B, C, T)
            return (noisy_f, clean_f)
        # Fallback: different shapes -> separate launches.
        return (bp_filter(noisy_track, self.taps), bp_filter(clean_track, self.taps))


# ----------------------------------------------------------------------------
# Reference (pure numpy, float64) for correctness check
# ----------------------------------------------------------------------------
def _ref_filter(x: np.ndarray, taps: np.ndarray) -> np.ndarray:
    B, C, T = x.shape
    K = taps.shape[0]
    pad_l = (K - 1) // 2
    pad_r = K - 1 - pad_l
    out = np.zeros((B, C, T), dtype=np.float64)
    xp = np.pad(x.astype(np.float64), ((0, 0), (0, 0), (pad_l, pad_r)))
    for k in range(K):
        out += float(taps[k]) * xp[:, :, k:k + T]
    return out


if __name__ == "__main__":
    # Small audio-like shapes: batch=2, channels=1, time=256
    key = jax.random.PRNGKey(0)
    k1, k2 = jax.random.split(key)
    noisy = jax.random.normal(k1, (2, 1, 256), dtype=jnp.float32)
    clean = jax.random.normal(k2, (2, 1, 256), dtype=jnp.float32)

    # sample_rate=16kHz, pass band 300 Hz .. 4 kHz
    band = BandMask(sample_rate=16000.0, min_freq=300.0, max_freq=4000.0, num_taps=33)

    noisy_f, clean_f = band.forward(noisy, clean)
    jax.block_until_ready((noisy_f, clean_f))

    # sanity check against numpy reference (tolerance allows for MXU f32 matmul rounding)
    ref_noisy = _ref_filter(np.asarray(noisy), band.taps)
    ref_clean = _ref_filter(np.asarray(clean), band.taps)
    assert np.allclose(np.asarray(noisy_f), ref_noisy, atol=5e-3, rtol=1e-2), \
        np.max(np.abs(np.asarray(noisy_f) - ref_noisy))
    assert np.allclose(np.asarray(clean_f), ref_clean, atol=5e-3, rtol=1e-2), \
        np.max(np.abs(np.asarray(clean_f) - ref_clean))

    print("KERNEL_OK")
</pallas_src>

<mosaic_0001>
module attributes {stable_mosaic.version = 11 : i64} {
  func.func @_fir_kernel(%arg0: i32, %arg1: i32, %arg2: memref<8x256xf32, #tpu.memory_space<vmem>>, %arg3: memref<8x128xf32, #tpu.memory_space<vmem>>, %arg4: memref<128x128xf32, #tpu.memory_space<vmem>>, %arg5: memref<128x128xf32, #tpu.memory_space<vmem>>, %arg6: memref<8x256xf32, #tpu.memory_space<vmem>>) attributes {dimension_semantics = [#tpu.dimension_semantics<parallel>, #tpu.dimension_semantics<parallel>], iteration_bounds = array<i64: 1, 1>, scalar_prefetch = 0 : i64, scratch_operands = 0 : i64, tpu.core_type = #tpu.core_type<tc>, window_params = [{transform_indices = @transform_0, window_bounds = array<i64: 8, 256>}, {transform_indices = @transform_1, window_bounds = array<i64: 8, 128>}, {pipeline_mode = #tpu.pipeline_mode<synchronous>, transform_indices = @transform_2, window_bounds = array<i64: 128, 128>}, {pipeline_mode = #tpu.pipeline_mode<synchronous>, transform_indices = @transform_3, window_bounds = array<i64: 128, 128>}, {transform_indices = @transform_4, window_bounds = array<i64: 8, 256>}]} {
    %c0 = arith.constant 0 : index
    %c0_0 = arith.constant 0 : index
    %0 = vector.load %arg4[%c0, %c0_0] : memref<128x128xf32, #tpu.memory_space<vmem>>, vector<128x128xf32>
    %c0_1 = arith.constant 0 : index
    %c0_2 = arith.constant 0 : index
    %1 = vector.load %arg5[%c0_1, %c0_2] : memref<128x128xf32, #tpu.memory_space<vmem>>, vector<128x128xf32>
    %c0_3 = arith.constant 0 : index
    %c0_4 = arith.constant 0 : index
    %2 = vector.load %arg2[%c0_3, %c0_4] : memref<8x256xf32, #tpu.memory_space<vmem>>, vector<8x128xf32>
    %c0_5 = arith.constant 0 : index
    %c128 = arith.constant 128 : index
    %3 = vector.load %arg2[%c0_5, %c128] : memref<8x256xf32, #tpu.memory_space<vmem>>, vector<8x128xf32>
    %cst = arith.constant dense<0.000000e+00> : vector<8x128xf32>
    %4 = tpu.matmul %2, %0, %cst {dimension_numbers = #tpu.dot_dimension_numbers<[1], [0], [0], [1], [0, 0, 1, 1], [], []>, precision = #tpu.contract_precision<fp32>} : vector<8x128xf32>, vector<128x128xf32>, vector<8x128xf32> -> vector<8x128xf32>
    %cst_6 = arith.constant dense<0.000000e+00> : vector<8x128xf32>
    %5 = tpu.matmul %3, %1, %cst_6 {dimension_numbers = #tpu.dot_dimension_numbers<[1], [0], [0], [1], [0, 0, 1, 1], [], []>, precision = #tpu.contract_precision<fp32>} : vector<8x128xf32>, vector<128x128xf32>, vector<8x128xf32> -> vector<8x128xf32>
    %6 = arith.addf %4, %5 : vector<8x128xf32>
    %c0_7 = arith.constant 0 : index
    %c0_8 = arith.constant 0 : index
    %7 = vector.load %arg6[%c0_7, %c0_8] : memref<8x256xf32, #tpu.memory_space<vmem>>, vector<8x128xf32>
    tpu.vector_store %arg6[%c0_7, %c0_8], %6 {strides = array<i32>} : memref<8x256xf32, #tpu.memory_space<vmem>>, vector<8x128xf32>,
    %c0_9 = arith.constant 0 : index
    %c128_10 = arith.constant 128 : index
    %8 = vector.load %arg2[%c0_9, %c128_10] : memref<8x256xf32, #tpu.memory_space<vmem>>, vector<8x128xf32>
    %c0_11 = arith.constant 0 : index
    %c0_12 = arith.constant 0 : index
    %9 = vector.load %arg3[%c0_11, %c0_12] : memref<8x128xf32, #tpu.memory_space<vmem>>, vector<8x128xf32>
    %cst_13 = arith.constant dense<0.000000e+00> : vector<8x128xf32>
    %10 = tpu.matmul %8, %0, %cst_13 {dimension_numbers = #tpu.dot_dimension_numbers<[1], [0], [0], [1], [0, 0, 1, 1], [], []>, precision = #tpu.contract_precision<fp32>} : vector<8x128xf32>, vector<128x128xf32>, vector<8x128xf32> -> vector<8x128xf32>
    %cst_14 = arith.constant dense<0.000000e+00> : vector<8x128xf32>
    %11 = tpu.matmul %9, %1, %cst_14 {dimension_numbers = #tpu.dot_dimension_numbers<[1], [0], [0], [1], [0, 0, 1, 1], [], []>, precision = #tpu.contract_precision<fp32>} : vector<8x128xf32>, vector<128x128xf32>, vector<8x128xf32> -> vector<8x128xf32>
    %12 = arith.addf %10, %11 : vector<8x128xf32>
    %c0_15 = arith.constant 0 : index
    %c128_16 = arith.constant 128 : index
    %13 = vector.load %arg6[%c0_15, %c128_16] : memref<8x256xf32, #tpu.memory_space<vmem>>, vector<8x128xf32>
    tpu.vector_store %arg6[%c0_15, %c128_16], %12 {strides = array<i32>} : memref<8x256xf32, #tpu.memory_space<vmem>>, vector<8x128xf32>,
    return
  }
  func.func @transform_0(%arg0: i32, %arg1: i32) -> (i32, i32) {
    %c0_i32 = arith.constant 0 : i32
    return %arg0, %arg1 : i32, i32
  }
  func.func @transform_1(%arg0: i32, %arg1: i32) -> (i32, i32) {
    %c1_i32 = arith.constant 1 : i32
    %0 = arith.addi %arg1, %c1_i32 : i32
    %c2_i32 = arith.constant 2 : i32
    %1 = arith.muli %0, %c2_i32 : i32
    %c0_i32 = arith.constant 0 : i32
    return %arg0, %1 : i32, i32
  }
  func.func @transform_2(%arg0: i32, %arg1: i32) -> (i32, i32) {
    %c0_i32 = arith.constant 0 : i32
    %c0_i32_0 = arith.constant 0 : i32
    %c0_i32_1 = arith.constant 0 : i32
    return %c0_i32, %c0_i32_0 : i32, i32
  }
  func.func @transform_3(%arg0: i32, %arg1: i32) -> (i32, i32) {
    %c0_i32 = arith.constant 0 : i32
    %c0_i32_0 = arith.constant 0 : i32
    %c0_i32_1 = arith.constant 0 : i32
    return %c0_i32, %c0_i32_0 : i32, i32
  }
  func.func @transform_4(%arg0: i32, %arg1: i32) -> (i32, i32) {
    %c0_i32 = arith.constant 0 : i32
    return %arg0, %arg1 : i32, i32
  }
}

</mosaic_0001>

<llo_original>
// kernel: tpu_custom_call.1
$region0: #{tpu_custom_call.1}
  #allocation0 [shape = 'u32[]', space=smem, size = 0x4, offset = 0x4, fixed_abs, tag = 'smem constant byte address 0x4 - core index']
  #allocation1 [shape = 'u32[144,128]{1,0:T(1,128)}', space=vmem, size = 0x12000, scoped, tag = 'internal scratch']
  %s0 = inlined_call_operand.hbm [shape: f32[8,384], index: 0, kind: input, shape index: {}]
  %s1 = inlined_call_operand.hbm [shape: f32[8,384], index: 1, kind: input, shape index: {}]
  %s2 = inlined_call_operand.hbm [shape: f32[128,128], index: 2, kind: input, shape index: {}]
  %s3 = inlined_call_operand.hbm [shape: f32[128,128], index: 3, kind: input, shape index: {}]
  %s4 = inlined_call_operand.hbm [shape: f32[8,256], index: 4, kind: output, shape index: {}]
  %s5 = sld [smem:[#allocation0]]
  $region42: #{tpu_custom_call.1} parent=0
    _
  %s7 = ssub.s32 1, %s5
  %s8 = scalar_select 0, %s7, %s5
  $region1: #{tpu_custom_call.1} parent=0
    #allocation2 [shape = 'u8[8192]{0}', space=vmem, size = 0x2000, scoped, tag = 'input window, operand 0, single buffered']
    #allocation3 [shape = 's32[1]{0}', space=sflag, size = 0x4, scoped, tag = 'scoped memory for tpu_custom_call.1']
    #allocation4 [shape = 's32[1]{0}', space=sflag, size = 0x4, scoped, tag = 'scoped memory for tpu_custom_call.1']
    #allocation5 [shape = 'u8[4096]{0}', space=vmem, size = 0x1000, scoped, tag = 'input window, operand 1, single buffered']
    #allocation6 [shape = 's32[1]{0}', space=sflag, size = 0x4, scoped, tag = 'scoped memory for tpu_custom_call.1']
    #allocation7 [shape = 'u8[65536]{0}', space=vmem, size = 0x10000, scoped, tag = 'input window, operand 2, single buffered']
    #allocation8 [shape = 'u8[65536]{0}', space=vmem, size = 0x10000, scoped, tag = 'input window, operand 3, single buffered']
    #allocation9 [shape = 's32[1]{0}', space=sflag, size = 0x4, scoped, tag = 'scoped memory for tpu_custom_call.1']
    #allocation10 [shape = 'u8[8192]{0}', space=vmem, size = 0x2000, scoped, tag = 'output window, operand 0, single buffered']
    %9 = vsyncpa [#allocation3], 0
    %10 = vsyncpa [#allocation6], 0
    %11 = vsyncpa [#allocation9], 0
    %12 = vsyncpa [#allocation4], 0
    // Predicated region
    $region2: #{tpu_custom_call.1} parent=1 // pred_check
      _
    $region3: #{tpu_custom_call.1} parent=1 // pred_check_branch
      %14 = sbr.rel (0) target = $region5
    $region4: #{tpu_custom_call.1} parent=1 // pred_region
      %s16 = ssub.s32 256, 256
      %17 = vsyncadd [#allocation3], %s16
      %s19 = sshll.u32 [#allocation2], 4
      %s20 = int_to_ptr.vmem [resolvable:$true] %s19
      %22 = dma.hbm_to_vmem [thread:$0]  %s0, 256, %s20, [#allocation3]
    $region5: #{tpu_custom_call.1} parent=1 // pred_fallthru
      _
    // Predicated region
    $region6: #{tpu_custom_call.1} parent=1 // pred_check
      _
    $region7: #{tpu_custom_call.1} parent=1 // pred_check_branch
      %24 = sbr.rel (0) target = $region9
    $region8: #{tpu_custom_call.1} parent=1 // pred_region
      %s25 = sadd.s32 0, 1
      %s26 = smul.u32 %s25, 2
      %s28 = ssub.s32 128, 128
      %29 = vsyncadd [#allocation6], %s28
      %s30 = smul.addr %s26, 128
      %s31 = scalar_lea.hbm %s1, %s30
      %s33 = sshll.u32 [#allocation5], 4
      %s34 = int_to_ptr.vmem [resolvable:$true] %s33
      %36 = dma.hbm_to_vmem [thread:$0]  %s31, 128, %s34, [#allocation6]
    $region9: #{tpu_custom_call.1} parent=1 // pred_fallthru
      _
    // Predicated region
    $region10: #{tpu_custom_call.1} parent=1 // pred_check
      _
    $region11: #{tpu_custom_call.1} parent=1 // pred_check_branch
      %38 = sbr.rel (0) target = $region13
    $region12: #{tpu_custom_call.1} parent=1 // pred_region
      %s40 = ssub.s32 2048, 2048
      %41 = vsyncadd [#allocation6], %s40
      %s42 = sshll.u32 [#allocation7], 4
      %s43 = int_to_ptr.vmem [resolvable:$true] %s42
      %48 = dma.hbm_to_vmem [thread:$0]  %s2, 2048, %s43, [#allocation6], 128, 128, 8
    $region13: #{tpu_custom_call.1} parent=1 // pred_fallthru
      _
    // Predicated region
    $region14: #{tpu_custom_call.1} parent=1 // pred_check
      _
    $region15: #{tpu_custom_call.1} parent=1 // pred_check_branch
      %50 = sbr.rel (0) target = $region17
    $region16: #{tpu_custom_call.1} parent=1 // pred_region
      %s52 = ssub.s32 2048, 2048
      %53 = vsyncadd [#allocation9], %s52
      %s54 = sshll.u32 [#allocation8], 4
      %s55 = int_to_ptr.vmem [resolvable:$true] %s54
      %60 = dma.hbm_to_vmem [thread:$0]  %s3, 2048, %s55, [#allocation9], 128, 128, 8
    $region17: #{tpu_custom_call.1} parent=1 // pred_fallthru
      _
    // Predicated region
    $region18: #{tpu_custom_call.1} parent=1 // pred_check
      _
    $region19: #{tpu_custom_call.1} parent=1 // pred_check_branch
      %62 = sbr.rel (0) target = $region21
    $region20: #{tpu_custom_call.1} parent=1 // pred_region
      %63 = dma.done [#allocation3], 256
    $region21: #{tpu_custom_call.1} parent=1 // pred_fallthru
      _
    // Predicated region
    $region22: #{tpu_custom_call.1} parent=1 // pred_check
      _
    $region23: #{tpu_custom_call.1} parent=1 // pred_check_branch
      %65 = sbr.rel (0) target = $region25
    $region24: #{tpu_custom_call.1} parent=1 // pred_region
      %66 = dma.done [#allocation6], 128
    $region25: #{tpu_custom_call.1} parent=1 // pred_fallthru
      _
    // Predicated region
    $region26: #{tpu_custom_call.1} parent=1 // pred_check
      _
    $region27: #{tpu_custom_call.1} parent=1 // pred_check_branch
      %68 = sbr.rel (0) target = $region29
    $region28: #{tpu_custom_call.1} parent=1 // pred_region
      %69 = dma.done [#allocation6], 2048
    $region29: #{tpu_custom_call.1} parent=1 // pred_fallthru
      _
    // Predicated region
    $region30: #{tpu_custom_call.1} parent=1 // pred_check
      _
    $region31: #{tpu_custom_call.1} parent=1 // pred_check_branch
      %71 = sbr.rel (0) target = $region33
    $region32: #{tpu_custom_call.1} parent=1 // pred_region
      %72 = dma.done [#allocation9], 2048
    $region33: #{tpu_custom_call.1} parent=1 // pred_fallthru
      _
    %s73 = sadd.s32 0, 1
    %s74 = smul.u32 %s73, 2
    %v75 = vld [vmem:[#allocation7] sm:$0xff]
    %v76 = vld [vmem:[#allocation7 + $0x8] sm:$0xff]
    %v77 = vld [vmem:[#allocation7 + $0x10] sm:$0xff]
    %v78 = vld [vmem:[#allocation7 + $0x18] sm:$0xff]
    %v79 = vld [vmem:[#allocation7 + $0x20] sm:$0xff]
    %v80 = vld [vmem:[#allocation7 + $0x28] sm:$0xff]
    %v81 = vld [vmem:[#allocation7 + $0x30] sm:$0xff]
    %v82 = vld [vmem:[#allocation7 + $0x38] sm:$0xff]
    %v83 = vld [vmem:[#allocation7 + $0x40] sm:$0xff]
    %v84 = vld [vmem:[#allocation7 + $0x48] sm:$0xff]
    %v85 = vld [vmem:[#allocation7 + $0x50] sm:$0xff]
    %v86 = vld [vmem:[#allocation7 + $0x58] sm:$0xff]
    %v87 = vld [vmem:[#allocation7 + $0x60] sm:$0xff]
    %v88 = vld [vmem:[#allocation7 + $0x68] sm:$0xff]
    %v89 = vld [vmem:[#allocation7 + $0x70] sm:$0xff]
    %v90 = vld [vmem:[#allocation7 + $0x78] sm:$0xff]
    %v91 = vld [vmem:[#allocation8] sm:$0xff]
    %v92 = vld [vmem:[#allocation8 + $0x8] sm:$0xff]
    %v93 = vld [vmem:[#allocation8 + $0x10] sm:$0xff]
    %v94 = vld [vmem:[#allocation8 + $0x18] sm:$0xff]
    %v95 = vld [vmem:[#allocation8 + $0x20] sm:$0xff]
    %v96 = vld [vmem:[#allocation8 + $0x28] sm:$0xff]
    %v97 = vld [vmem:[#allocation8 + $0x30] sm:$0xff]
    %v98 = vld [vmem:[#allocation8 + $0x38] sm:$0xff]
    %v99 = vld [vmem:[#allocation8 + $0x40] sm:$0xff]
    %v100 = vld [vmem:[#allocation8 + $0x48] sm:$0xff]
    %v101 = vld [vmem:[#allocation8 + $0x50] sm:$0xff]
    %v102 = vld [vmem:[#allocation8 + $0x58] sm:$0xff]
    %v103 = vld [vmem:[#allocation8 + $0x60] sm:$0xff]
    %v104 = vld [vmem:[#allocation8 + $0x68] sm:$0xff]
    %v105 = vld [vmem:[#allocation8 + $0x70] sm:$0xff]
    %v106 = vld [vmem:[#allocation8 + $0x78] sm:$0xff]
    %v107 = vld [vmem:[#allocation2] sm:$0xff]
    %v108 = vld [vmem:[#allocation2 + $0x8] sm:$0xff]
    %109 = vmatprep.subr.mxu0 0.0
    %v110 = vand.u32 %v91, 4294901760
    %111 = vmatpush1.msra.mxu0 %v110
    %112 = vmatprep.subr.mxu0 0.0
    %v113 = vand.u32 %v92, 4294901760
    %114 = vmatpush1.msra.mxu0 %v113
    %115 = vmatprep.subr.mxu0 0.0
    %v116 = vand.u32 %v93, 4294901760
    %117 = vmatpush1.msra.mxu0 %v116
    %118 = vmatprep.subr.mxu0 0.0
    %v119 = vand.u32 %v94, 4294901760
    %120 = vmatpush1.msra.mxu0 %v119
    %121 = vmatprep.subr.mxu0 0.0
    %v122 = vand.u32 %v95, 4294901760
    %123 = vmatpush1.msra.mxu0 %v122
    %124 = vmatprep.subr.mxu0 0.0
    %v125 = vand.u32 %v96, 4294901760
    %126 = vmatpush1.msra.mxu0 %v125
    %127 = vmatprep.subr.mxu0 0.0
    %v128 = vand.u32 %v97, 4294901760
    %129 = vmatpush1.msra.mxu0 %v128
    %130 = vmatprep.subr.mxu0 0.0
    %v131 = vand.u32 %v98, 4294901760
    %132 = vmatpush1.msra.mxu0 %v131
    %133 = vmatprep.subr.mxu0 0.0
    %v134 = vand.u32 %v99, 4294901760
    %135 = vmatpush1.msra.mxu0 %v134
    %136 = vmatprep.subr.mxu0 0.0
    %v137 = vand.u32 %v100, 4294901760
    %138 = vmatpush1.msra.mxu0 %v137
    %139 = vmatprep.subr.mxu0 0.0
    %v140 = vand.u32 %v101, 4294901760
    %141 = vmatpush1.msra.mxu0 %v140
    %142 = vmatprep.subr.mxu0 0.0
    %v143 = vand.u32 %v102, 4294901760
    %144 = vmatpush1.msra.mxu0 %v143
    %145 = vmatprep.subr.mxu0 0.0
    %v146 = vand.u32 %v103, 4294901760
    %147 = vmatpush1.msra.mxu0 %v146
    %148 = vmatprep.subr.mxu0 0.0
    %v149 = vand.u32 %v104, 4294901760
    %150 = vmatpush1.msra.mxu0 %v149
    %151 = vmatprep.subr.mxu0 0.0
    %v152 = vand.u32 %v105, 4294901760
    %153 = vmatpush1.msra.mxu0 %v152
    %154 = vmatprep.subr.mxu0 0.0
    %v155 = vand.u32 %v106, 4294901760
    %156 = vmatpush1.msra.mxu0 %v155
    %157 = vmatprep.subr.mxu0 0.0
    %158 = vmatpush1.msra.mxu0 0.0
    %159 = vmatprep.subr.mxu0 0.0
    %160 = vmatpush1.msra.mxu0 0.0
    %161 = vmatprep.subr.mxu0 0.0
    %162 = vmatpush1.msra.mxu0 0.0
    %163 = vmatprep.subr.mxu0 0.0
    %164 = vmatpush1.msra.mxu0 0.0
    %165 = vmatprep.subr.mxu0 0.0
    %166 = vmatpush1.msra.mxu0 0.0
    %167 = vmatprep.subr.mxu0 0.0
    %168 = vmatpush1.msra.mxu0 0.0
    %169 = vmatprep.subr.mxu0 0.0
    %170 = vmatpush1.msra.mxu0 0.0
    %171 = vmatprep.subr.mxu0 0.0
    %172 = vmatpush1.msra.mxu0 0.0
    %173 = vmatprep.subr.mxu0 0.0
    %174 = vmatpush1.msra.mxu0 0.0
    %175 = vmatprep.subr.mxu0 0.0
    %176 = vmatpush1.msra.mxu0 0.0
    %177 = vmatprep.subr.mxu0 0.0
    %178 = vmatpush1.msra.mxu0 0.0
    %179 = vmatprep.subr.mxu0 0.0
    %180 = vmatpush1.msra.mxu0 0.0
    %181 = vmatprep.subr.mxu0 0.0
    %182 = vmatpush1.msra.mxu0 0.0
    %183 = vmatprep.subr.mxu0 0.0
    %184 = vmatpush1.msra.mxu0 0.0
    %185 = vmatprep.subr.mxu0 0.0
    %186 = vmatpush1.msra.mxu0 0.0
    %187 = vmatprep.subr.mxu0 0.0
    %188 = vmatpush1.msra.mxu0 0.0
    %189 = vmatprep.mubr.f32.mxu0 0.0
    %v190 = vand.u32 %v108, 4294901760
    %v191 = vsub.f32 %v108, %v190
    %v192 = vand.u32 %v191, 4294901760
    %v193 = vsub.f32 %v191, %v192
    %v194 = vand.u32 %v193, 4294901760
    %195 = vmatmul.mubr.f32.gmra.mrb[0].mxu0 %v194
    %v196 = vpop.f32.mrb[0].mxu0
    %v197 = vadd.f32 0.0, %v196
    %v198 = vpop.f32.mrb[0].mxu0
    %199 = vdwg.mxu0
    %200 = vmatprep.subr.mxu0 0.0
    %v201 = vand.u32 %v91, 4294901760
    %v202 = vsub.f32 %v91, %v201
    %v203 = vand.u32 %v202, 4294901760
    %v204 = vsub.f32 %v202, %v203
    %v205 = vand.u32 %v204, 4294901760
    %206 = vmatpush1.msra.mxu0 %v205
    %207 = vmatprep.subr.mxu0 0.0
    %v208 = vand.u32 %v92, 4294901760
    %v209 = vsub.f32 %v92, %v208
    %v210 = vand.u32 %v209, 4294901760
    %v211 = vsub.f32 %v209, %v210
    %v212 = vand.u32 %v211, 4294901760
    %213 = vmatpush1.msra.mxu0 %v212
    %214 = vmatprep.subr.mxu0 0.0
    %v215 = vand.u32 %v93, 4294901760
    %v216 = vsub.f32 %v93, %v215
    %v217 = vand.u32 %v216, 4294901760
    %v218 = vsub.f32 %v216, %v217
    %v219 = vand.u32 %v218, 4294901760
    %220 = vmatpush1.msra.mxu0 %v219
    %221 = vmatprep.subr.mxu0 0.0
    %v222 = vand.u32 %v94, 4294901760
    %v223 = vsub.f32 %v94, %v222
    %v224 = vand.u32 %v223, 4294901760
    %v225 = vsub.f32 %v223, %v224
    %v226 = vand.u32 %v225, 4294901760
    %227 = vmatpush1.msra.mxu0 %v226
    %228 = vmatprep.subr.mxu0 0.0
    %v229 = vand.u32 %v95, 4294901760
    %v230 = vsub.f32 %v95, %v229
    %v231 = vand.u32 %v230, 4294901760
    %v232 = vsub.f32 %v230, %v231
    %v233 = vand.u32 %v232, 4294901760
    %234 = vmatpush1.msra.mxu0 %v233
    %235 = vmatprep.subr.mxu0 0.0
    %v236 = vand.u32 %v96, 4294901760
    %v237 = vsub.f32 %v96, %v236
    %v238 = vand.u32 %v237, 4294901760
    %v239 = vsub.f32 %v237, %v238
    %v240 = vand.u32 %v239, 4294901760
    %241 = vmatpush1.msra.mxu0 %v240
    %242 = vmatprep.subr.mxu0 0.0
    %v243 = vand.u32 %v97, 4294901760
    %v244 = vsub.f32 %v97, %v243
    %v245 = vand.u32 %v244, 4294901760
    %v246 = vsub.f32 %v244, %v245
    %v247 = vand.u32 %v246, 4294901760
    %248 = vmatpush1.msra.mxu0 %v247
    %249 = vmatprep.subr.mxu0 0.0
    %v250 = vand.u32 %v98, 4294901760
    %v251 = vsub.f32 %v98, %v250
    %v252 = vand.u32 %v251, 4294901760
    %v253 = vsub.f32 %v251, %v252
    %v254 = vand.u32 %v253, 4294901760
    %255 = vmatpush1.msra.mxu0 %v254
    %256 = vmatprep.subr.mxu0 0.0
    %v257 = vand.u32 %v99, 4294901760
    %v258 = vsub.f32 %v99, %v257
    %v259 = vand.u32 %v258, 4294901760
    %v260 = vsub.f32 %v258, %v259
    %v261 = vand.u32 %v260, 4294901760
    %262 = vmatpush1.msra.mxu0 %v261
    %263 = vmatprep.subr.mxu0 0.0
    %v264 = vand.u32 %v100, 4294901760
    %v265 = vsub.f32 %v100, %v264
    %v266 = vand.u32 %v265, 4294901760
    %v267 = vsub.f32 %v265, %v266
    %v268 = vand.u32 %v267, 4294901760
    %269 = vmatpush1.msra.mxu0 %v268
    %270 = vmatprep.subr.mxu0 0.0
    %v271 = vand.u32 %v101, 4294901760
    %v272 = vsub.f32 %v101, %v271
    %v273 = vand.u32 %v272, 4294901760
    %v274 = vsub.f32 %v272, %v273
    %v275 = vand.u32 %v274, 4294901760
    %276 = vmatpush1.msra.mxu0 %v275
    %277 = vmatprep.subr.mxu0 0.0
    %v278 = vand.u32 %v102, 4294901760
    %v279 = vsub.f32 %v102, %v278
    %v280 = vand.u32 %v279, 4294901760
    %v281 = vsub.f32 %v279, %v280
    %v282 = vand.u32 %v281, 4294901760
    %283 = vmatpush1.msra.mxu0 %v282
    %284 = vmatprep.subr.mxu0 0.0
    %v285 = vand.u32 %v103, 4294901760
    %v286 = vsub.f32 %v103, %v285
    %v287 = vand.u32 %v286, 4294901760
    %v288 = vsub.f32 %v286, %v287
    %v289 = vand.u32 %v288, 4294901760
    %290 = vmatpush1.msra.mxu0 %v289
    %291 = vmatprep.subr.mxu0 0.0
    %v292 = vand.u32 %v104, 4294901760
    %v293 = vsub.f32 %v104, %v292
    %v294 = vand.u32 %v293, 4294901760
    %v295 = vsub.f32 %v293, %v294
    %v296 = vand.u32 %v295, 4294901760
    %297 = vmatpush1.msra.mxu0 %v296
    %298 = vmatprep.subr.mxu0 0.0
    %v299 = vand.u32 %v105, 4294901760
    %v300 = vsub.f32 %v105, %v299
    %v301 = vand.u32 %v300, 4294901760
    %v302 = vsub.f32 %v300, %v301
    %v303 = vand.u32 %v302, 4294901760
    %304 = vmatpush1.msra.mxu0 %v303
    %305 = vmatprep.subr.mxu0 0.0
    %v306 = vand.u32 %v106, 4294901760
    %v307 = vsub.f32 %v106, %v306
    %v308 = vand.u32 %v307, 4294901760
    %v309 = vsub.f32 %v307, %v308
    %v310 = vand.u32 %v309, 4294901760
    %311 = vmatpush1.msra.mxu0 %v310
    %312 = vmatprep.subr.mxu0 0.0
    %313 = vmatpush1.msra.mxu0 0.0
    %314 = vmatprep.subr.mxu0 0.0
    %315 = vmatpush1.msra.mxu0 0.0
    %316 = vmatprep.subr.mxu0 0.0
    %317 = vmatpush1.msra.mxu0 0.0
    %318 = vmatprep.subr.mxu0 0.0
    %319 = vmatpush1.msra.mxu0 0.0
    %320 = vmatprep.subr.mxu0 0.0
    %321 = vmatpush1.msra.mxu0 0.0
    %322 = vmatprep.subr.mxu0 0.0
    %323 = vmatpush1.msra.mxu0 0.0
    %324 = vmatprep.subr.mxu0 0.0
    %325 = vmatpush1.msra.mxu0 0.0
    %326 = vmatprep.subr.mxu0 0.0
    %327 = vmatpush1.msra.mxu0 0.0
    %328 = vmatprep.subr.mxu0 0.0
    %329 = vmatpush1.msra.mxu0 0.0
    %330 = vmatprep.subr.mxu0 0.0
    %331 = vmatpush1.msra.mxu0 0.0
    %332 = vmatprep.subr.mxu0 0.0
    %333 = vmatpush1.msra.mxu0 0.0
    %334 = vmatprep.subr.mxu0 0.0
    %335 = vmatpush1.msra.mxu0 0.0
    %336 = vmatprep.subr.mxu0 0.0
    %337 = vmatpush1.msra.mxu0 0.0
    %338 = vmatprep.subr.mxu0 0.0
    %339 = vmatpush1.msra.mxu0 0.0
    %340 = vmatprep.subr.mxu0 0.0
    %341 = vmatpush1.msra.mxu0 0.0
    %342 = vmatprep.subr.mxu0 0.0
    %343 = vmatpush1.msra.mxu0 0.0
    %344 = vmatprep.mubr.f32.mxu0 0.0
    %v345 = vand.u32 %v108, 4294901760
    %346 = vmatmul.mubr.f32.gmra.mrb[0].mxu0 %v345
    %v347 = vpop.f32.mrb[0].mxu0
    %v348 = vadd.f32 %v197, %v347
    %v349 = vpop.f32.mrb[0].mxu0
    %350 = vdwg.mxu0
    %351 = vmatprep.subr.mxu0 0.0
    %v352 = vand.u32 %v91, 4294901760
    %v353 = vsub.f32 %v91, %v352
    %354 = vmatpush1.msra.mxu0 %v353
    %355 = vmatprep.subr.mxu0 0.0
    %v356 = vand.u32 %v92, 4294901760
    %v357 = vsub.f32 %v92, %v356
    %358 = vmatpush1.msra.mxu0 %v357
    %359 = vmatprep.subr.mxu0 0.0
    %v360 = vand.u32 %v93, 4294901760
    %v361 = vsub.f32 %v93, %v360
    %362 = vmatpush1.msra.mxu0 %v361
    %363 = vmatprep.subr.mxu0 0.0
    %v364 = vand.u32 %v94, 4294901760
    %v365 = vsub.f32 %v94, %v364
    %366 = vmatpush1.msra.mxu0 %v365
    %367 = vmatprep.subr.mxu0 0.0
    %v368 = vand.u32 %v95, 4294901760
    %v369 = vsub.f32 %v95, %v368
    %370 = vmatpush1.msra.mxu0 %v369
    %371 = vmatprep.subr.mxu0 0.0
    %v372 = vand.u32 %v96, 4294901760
    %v373 = vsub.f32 %v96, %v372
    %374 = vmatpush1.msra.mxu0 %v373
    %375 = vmatprep.subr.mxu0 0.0
    %v376 = vand.u32 %v97, 4294901760
    %v377 = vsub.f32 %v97, %v376
    %378 = vmatpush1.msra.mxu0 %v377
    %379 = vmatprep.subr.mxu0 0.0
    %v380 = vand.u32 %v98, 4294901760
    %v381 = vsub.f32 %v98, %v380
    %382 = vmatpush1.msra.mxu0 %v381
    %383 = vmatprep.subr.mxu0 0.0
    %v384 = vand.u32 %v99, 4294901760
    %v385 = vsub.f32 %v99, %v384
    %386 = vmatpush1.msra.mxu0 %v385
    %387 = vmatprep.subr.mxu0 0.0
    %v388 = vand.u32 %v100, 4294901760
    %v389 = vsub.f32 %v100, %v388
    %390 = vmatpush1.msra.mxu0 %v389
    %391 = vmatprep.subr.mxu0 0.0
    %v392 = vand.u32 %v101, 4294901760
    %v393 = vsub.f32 %v101, %v392
    %394 = vmatpush1.msra.mxu0 %v393
    %395 = vmatprep.subr.mxu0 0.0
    %v396 = vand.u32 %v102, 4294901760
    %v397 = vsub.f32 %v102, %v396
    %398 = vmatpush1.msra.mxu0 %v397
    %399 = vmatprep.subr.mxu0 0.0
    %v400 = vand.u32 %v103, 4294901760
    %v401 = vsub.f32 %v103, %v400
    %402 = vmatpush1.msra.mxu0 %v401
    %403 = vmatprep.subr.mxu0 0.0
    %v404 = vand.u32 %v104, 4294901760
    %v405 = vsub.f32 %v104, %v404
    %406 = vmatpush1.msra.mxu0 %v405
    %407 = vmatprep.subr.mxu0 0.0
    %v408 = vand.u32 %v105, 4294901760
    %v409 = vsub.f32 %v105, %v408
    %410 = vmatpush1.msra.mxu0 %v409
    %411 = vmatprep.subr.mxu0 0.0
    %v412 = vand.u32 %v106, 4294901760
    %v413 = vsub.f32 %v106, %v412
    %414 = vmatpush1.msra.mxu0 %v413
    %415 = vmatprep.subr.mxu0 0.0
    %416 = vmatpush1.msra.mxu0 0.0
    %417 = vmatprep.subr.mxu0 0.0
    %418 = vmatpush1.msra.mxu0 0.0
    %419 = vmatprep.subr.mxu0 0.0
    %420 = vmatpush1.msra.mxu0 0.0
    %421 = vmatprep.subr.mxu0 0.0
    %422 = vmatpush1.msra.mxu0 0.0
    %423 = vmatprep.subr.mxu0 0.0
    %424 = vmatpush1.msra.mxu0 0.0
    %425 = vmatprep.subr.mxu0 0.0
    %426 = vmatpush1.msra.mxu0 0.0
    %427 = vmatprep.subr.mxu0 0.0
    %428 = vmatpush1.msra.mxu0 0.0
    %429 = vmatprep.subr.mxu0 0.0
    %430 = vmatpush1.msra.mxu0 0.0
    %431 = vmatprep.subr.mxu0 0.0
    %432 = vmatpush1.msra.mxu0 0.0
    %433 = vmatprep.subr.mxu0 0.0
    %434 = vmatpush1.msra.mxu0 0.0
    %435 = vmatprep.subr.mxu0 0.0
    %436 = vmatpush1.msra.mxu0 0.0
    %437 = vmatprep.subr.mxu0 0.0
    %438 = vmatpush1.msra.mxu0 0.0
    %439 = vmatprep.subr.mxu0 0.0
    %440 = vmatpush1.msra.mxu0 0.0
    %441 = vmatprep.subr.mxu0 0.0
    %442 = vmatpush1.msra.mxu0 0.0
    %443 = vmatprep.subr.mxu0 0.0
    %444 = vmatpush1.msra.mxu0 0.0
    %445 = vmatprep.subr.mxu0 0.0
    %446 = vmatpush1.msra.mxu0 0.0
    %447 = vmatprep.mubr.f32.mxu0 0.0
    %v448 = vand.u32 %v108, 4294901760
    %v449 = vsub.f32 %v108, %v448
    %450 = vmatmul.mubr.f32.gmra.mrb[0].mxu0 %v449
    %v451 = vpop.f32.mrb[0].mxu0
    %v452 = vadd.f32 %v348, %v451
    %v453 = vpop.f32.mrb[0].mxu0
    %454 = vdwg.mxu0
    %455 = vmatprep.subr.mxu0 0.0
    %v456 = vand.u32 %v91, 4294901760
    %457 = vmatpush1.msra.mxu0 %v456
    %458 = vmatprep.subr.mxu0 0.0
    %v459 = vand.u32 %v92, 4294901760
    %460 = vmatpush1.msra.mxu0 %v459
    %461 = vmatprep.subr.mxu0 0.0
    %v462 = vand.u32 %v93, 4294901760
    %463 = vmatpush1.msra.mxu0 %v462
    %464 = vmatprep.subr.mxu0 0.0
    %v465 = vand.u32 %v94, 4294901760
    %466 = vmatpush1.msra.mxu0 %v465
    %467 = vmatprep.subr.mxu0 0.0
    %v468 = vand.u32 %v95, 4294901760
    %469 = vmatpush1.msra.mxu0 %v468
    %470 = vmatprep.subr.mxu0 0.0
    %v471 = vand.u32 %v96, 4294901760
    %472 = vmatpush1.msra.mxu0 %v471
    %473 = vmatprep.subr.mxu0 0.0
    %v474 = vand.u32 %v97, 4294901760
    %475 = vmatpush1.msra.mxu0 %v474
    %476 = vmatprep.subr.mxu0 0.0
    %v477 = vand.u32 %v98, 4294901760
    %478 = vmatpush1.msra.mxu0 %v477
    %479 = vmatprep.subr.mxu0 0.0
    %v480 = vand.u32 %v99, 4294901760
    %481 = vmatpush1.msra.mxu0 %v480
    %482 = vmatprep.subr.mxu0 0.0
    %v483 = vand.u32 %v100, 4294901760
    %484 = vmatpush1.msra.mxu0 %v483
    %485 = vmatprep.subr.mxu0 0.0
    %v486 = vand.u32 %v101, 4294901760
    %487 = vmatpush1.msra.mxu0 %v486
    %488 = vmatprep.subr.mxu0 0.0
    %v489 = vand.u32 %v102, 4294901760
    %490 = vmatpush1.msra.mxu0 %v489
    %491 = vmatprep.subr.mxu0 0.0
    %v492 = vand.u32 %v103, 4294901760
    %493 = vmatpush1.msra.mxu0 %v492
    %494 = vmatprep.subr.mxu0 0.0
    %v495 = vand.u32 %v104, 4294901760
    %496 = vmatpush1.msra.mxu0 %v495
    %497 = vmatprep.subr.mxu0 0.0
    %v498 = vand.u32 %v105, 4294901760
    %499 = vmatpush1.msra.mxu0 %v498
    %500 = vmatprep.subr.mxu0 0.0
    %v501 = vand.u32 %v106, 4294901760
    %502 = vmatpush1.msra.mxu0 %v501
    %503 = vmatprep.subr.mxu0 0.0
    %504 = vmatpush1.msra.mxu0 0.0
    %505 = vmatprep.subr.mxu0 0.0
    %506 = vmatpush1.msra.mxu0 0.0
    %507 = vmatprep.subr.mxu0 0.0
    %508 = vmatpush1.msra.mxu0 0.0
    %509 = vmatprep.subr.mxu0 0.0
    %510 = vmatpush1.msra.mxu0 0.0
    %511 = vmatprep.subr.mxu0 0.0
    %512 = vmatpush1.msra.mxu0 0.0
    %513 = vmatprep.subr.mxu0 0.0
    %514 = vmatpush1.msra.mxu0 0.0
    %515 = vmatprep.subr.mxu0 0.0
    %516 = vmatpush1.msra.mxu0 0.0
    %517 = vmatprep.subr.mxu0 0.0
    %518 = vmatpush1.msra.mxu0 0.0
    %519 = vmatprep.subr.mxu0 0.0
    %520 = vmatpush1.msra.mxu0 0.0
    %521 = vmatprep.subr.mxu0 0.0
    %522 = vmatpush1.msra.mxu0 0.0
    %523 = vmatprep.subr.mxu0 0.0
    %524 = vmatpush1.msra.mxu0 0.0
    %525 = vmatprep.subr.mxu0 0.0
    %526 = vmatpush1.msra.mxu0 0.0
    %527 = vmatprep.subr.mxu0 0.0
    %528 = vmatpush1.msra.mxu0 0.0
    %529 = vmatprep.subr.mxu0 0.0
    %530 = vmatpush1.msra.mxu0 0.0
    %531 = vmatprep.subr.mxu0 0.0
    %532 = vmatpush1.msra.mxu0 0.0
    %533 = vmatprep.subr.mxu0 0.0
    %534 = vmatpush1.msra.mxu0 0.0
    %535 = vmatprep.mubr.f32.mxu0 0.0
    %v536 = vand.u32 %v108, 4294901760
    %v537 = vsub.f32 %v108, %v536
    %v538 = vand.u32 %v537, 4294901760
    %539 = vmatmul.mubr.f32.gmra.mrb[0].mxu0 %v538
    %v540 = vpop.f32.mrb[0].mxu0
    %v541 = vadd.f32 %v452, %v540
    %v542 = vpop.f32.mrb[0].mxu0
    %543 = vdwg.mxu0
    %544 = vmatprep.subr.mxu0 0.0
    %v545 = vand.u32 %v91, 4294901760
    %v546 = vsub.f32 %v91, %v545
    %v547 = vand.u32 %v546, 4294901760
    %548 = vmatpush1.msra.mxu0 %v547
    %549 = vmatprep.subr.mxu0 0.0
    %v550 = vand.u32 %v92, 4294901760
    %v551 = vsub.f32 %v92, %v550
    %v552 = vand.u32 %v551, 4294901760
    %553 = vmatpush1.msra.mxu0 %v552
    %554 = vmatprep.subr.mxu0 0.0
    %v555 = vand.u32 %v93, 4294901760
    %v556 = vsub.f32 %v93, %v555
    %v557 = vand.u32 %v556, 4294901760
    %558 = vmatpush1.msra.mxu0 %v557
    %559 = vmatprep.subr.mxu0 0.0
    %v560 = vand.u32 %v94, 4294901760
    %v561 = vsub.f32 %v94, %v560
    %v562 = vand.u32 %v561, 4294901760
    %563 = vmatpush1.msra.mxu0 %v562
    %564 = vmatprep.subr.mxu0 0.0
    %v565 = vand.u32 %v95, 4294901760
    %v566 = vsub.f32 %v95, %v565
    %v567 = vand.u32 %v566, 4294901760
    %568 = vmatpush1.msra.mxu0 %v567
    %569 = vmatprep.subr.mxu0 0.0
    %v570 = vand.u32 %v96, 4294901760
    %v571 = vsub.f32 %v96, %v570
    %v572 = vand.u32 %v571, 4294901760
    %573 = vmatpush1.msra.mxu0 %v572
    %574 = vmatprep.subr.mxu0 0.0
    %v575 = vand.u32 %v97, 4294901760
    %v576 = vsub.f32 %v97, %v575
    %v577 = vand.u32 %v576, 4294901760
    %578 = vmatpush1.msra.mxu0 %v577
    %579 = vmatprep.subr.mxu0 0.0
    %v580 = vand.u32 %v98, 4294901760
    %v581 = vsub.f32 %v98, %v580
    %v582 = vand.u32 %v581, 4294901760
    %583 = vmatpush1.msra.mxu0 %v582
    %584 = vmatprep.subr.mxu0 0.0
    %v585 = vand.u32 %v99, 4294901760
    %v586 = vsub.f32 %v99, %v585
    %v587 = vand.u32 %v586, 4294901760
    %588 = vmatpush1.msra.mxu0 %v587
    %589 = vmatprep.subr.mxu0 0.0
    %v590 = vand.u32 %v100, 4294901760
    %v591 = vsub.f32 %v100, %v590
    %v592 = vand.u32 %v591, 4294901760
    %593 = vmatpush1.msra.mxu0 %v592
    %594 = vmatprep.subr.mxu0 0.0
    %v595 = vand.u32 %v101, 4294901760
    %v596 = vsub.f32 %v101, %v595
    %v597 = vand.u32 %v596, 4294901760
    %598 = vmatpush1.msra.mxu0 %v597
    %599 = vmatprep.subr.mxu0 0.0
    %v600 = vand.u32 %v102, 4294901760
    %v601 = vsub.f32 %v102, %v600
    %v602 = vand.u32 %v601, 4294901760
    %603 = vmatpush1.msra.mxu0 %v602
    %604 = vmatprep.subr.mxu0 0.0
    %v605 = vand.u32 %v103, 4294901760
    %v606 = vsub.f32 %v103, %v605
    %v607 = vand.u32 %v606, 4294901760
    %608 = vmatpush1.msra.mxu0 %v607
    %609 = vmatprep.subr.mxu0 0.0
    %v610 = vand.u32 %v104, 4294901760
    %v611 = vsub.f32 %v104, %v610
    %v612 = vand.u32 %v611, 4294901760
    %613 = vmatpush1.msra.mxu0 %v612
    %614 = vmatprep.subr.mxu0 0.0
    %v615 = vand.u32 %v105, 4294901760
    %v616 = vsub.f32 %v105, %v615
    %v617 = vand.u32 %v616, 4294901760
    %618 = vmatpush1.msra.mxu0 %v617
    %619 = vmatprep.subr.mxu0 0.0
    %v620 = vand.u32 %v106, 4294901760
    %v621 = vsub.f32 %v106, %v620
    %v622 = vand.u32 %v621, 4294901760
    %623 = vmatpush1.msra.mxu0 %v622
    %624 = vmatprep.subr.mxu0 0.0
    %625 = vmatpush1.msra.mxu0 0.0
    %626 = vmatprep.subr.mxu0 0.0
    %627 = vmatpush1.msra.mxu0 0.0
    %628 = vmatprep.subr.mxu0 0.0
    %629 = vmatpush1.msra.mxu0 0.0
    %630 = vmatprep.subr.mxu0 0.0
    %631 = vmatpush1.msra.mxu0 0.0
    %632 = vmatprep.subr.mxu0 0.0
    %633 = vmatpush1.msra.mxu0 0.0
    %634 = vmatprep.subr.mxu0 0.0
    %635 = vmatpush1.msra.mxu0 0.0
    %636 = vmatprep.subr.mxu0 0.0
    %637 = vmatpush1.msra.mxu0 0.0
    %638 = vmatprep.subr.mxu0 0.0
    %639 = vmatpush1.msra.mxu0 0.0
    %640 = vmatprep.subr.mxu0 0.0
    %641 = vmatpush1.msra.mxu0 0.0
    %642 = vmatprep.subr.mxu0 0.0
    %643 = vmatpush1.msra.mxu0 0.0
    %644 = vmatprep.subr.mxu0 0.0
    %645 = vmatpush1.msra.mxu0 0.0
    %646 = vmatprep.subr.mxu0 0.0
    %647 = vmatpush1.msra.mxu0 0.0
    %648 = vmatprep.subr.mxu0 0.0
    %649 = vmatpush1.msra.mxu0 0.0
    %650 = vmatprep.subr.mxu0 0.0
    %651 = vmatpush1.msra.mxu0 0.0
    %652 = vmatprep.subr.mxu0 0.0
    %653 = vmatpush1.msra.mxu0 0.0
    %654 = vmatprep.subr.mxu0 0.0
    %655 = vmatpush1.msra.mxu0 0.0
    %656 = vmatprep.mubr.f32.mxu0 0.0
    %v657 = vand.u32 %v108, 4294901760
    %658 = vmatmul.mubr.f32.gmra.mrb[0].mxu0 %v657
    %v659 = vpop.f32.mrb[0].mxu0
    %v660 = vadd.f32 %v541, %v659
    %v661 = vpop.f32.mrb[0].mxu0
    %662 = vdwg.mxu0
    %663 = vmatprep.subr.mxu0 0.0
    %v664 = vand.u32 %v91, 4294901760
    %665 = vmatpush1.msra.mxu0 %v664
    %666 = vmatprep.subr.mxu0 0.0
    %v667 = vand.u32 %v92, 4294901760
    %668 = vmatpush1.msra.mxu0 %v667
    %669 = vmatprep.subr.mxu0 0.0
    %v670 = vand.u32 %v93, 4294901760
    %671 = vmatpush1.msra.mxu0 %v670
    %672 = vmatprep.subr.mxu0 0.0
    %v673 = vand.u32 %v94, 4294901760
    %674 = vmatpush1.msra.mxu0 %v673
    %675 = vmatprep.subr.mxu0 0.0
    %v676 = vand.u32 %v95, 4294901760
    %677 = vmatpush1.msra.mxu0 %v676
    %678 = vmatprep.subr.mxu0 0.0
    %v679 = vand.u32 %v96, 4294901760
    %680 = vmatpush1.msra.mxu0 %v679
    %681 = vmatprep.subr.mxu0 0.0
    %v682 = vand.u32 %v97, 4294901760
    %683 = vmatpush1.msra.mxu0 %v682
    %684 = vmatprep.subr.mxu0 0.0
    %v685 = vand.u32 %v98, 4294901760
    %686 = vmatpush1.msra.mxu0 %v685
    %687 = vmatprep.subr.mxu0 0.0
    %v688 = vand.u32 %v99, 4294901760
    %689 = vmatpush1.msra.mxu0 %v688
    %690 = vmatprep.subr.mxu0 0.0
    %v691 = vand.u32 %v100, 4294901760
    %692 = vmatpush1.msra.mxu0 %v691
    %693 = vmatprep.subr.mxu0 0.0
    %v694 = vand.u32 %v101, 4294901760
    %695 = vmatpush1.msra.mxu0 %v694
    %696 = vmatprep.subr.mxu0 0.0
    %v697 = vand.u32 %v102, 4294901760
    %698 = vmatpush1.msra.mxu0 %v697
    %699 = vmatprep.subr.mxu0 0.0
    %v700 = vand.u32 %v103, 4294901760
    %701 = vmatpush1.msra.mxu0 %v700
    %702 = vmatprep.subr.mxu0 0.0
    %v703 = vand.u32 %v104, 4294901760
    %704 = vmatpush1.msra.mxu0 %v703
    %705 = vmatprep.subr.mxu0 0.0
    %v706 = vand.u32 %v105, 4294901760
    %707 = vmatpush1.msra.mxu0 %v706
    %708 = vmatprep.subr.mxu0 0.0
    %v709 = vand.u32 %v106, 4294901760
    %710 = vmatpush1.msra.mxu0 %v709
    %711 = vmatprep.subr.mxu0 0.0
    %712 = vmatpush1.msra.mxu0 0.0
    %713 = vmatprep.subr.mxu0 0.0
    %714 = vmatpush1.msra.mxu0 0.0
    %715 = vmatprep.subr.mxu0 0.0
    %716 = vmatpush1.msra.mxu0 0.0
    %717 = vmatprep.subr.mxu0 0.0
    %718 = vmatpush1.msra.mxu0 0.0
    %719 = vmatprep.subr.mxu0 0.0
    %720 = vmatpush1.msra.mxu0 0.0
    %721 = vmatprep.subr.mxu0 0.0
    %722 = vmatpush1.msra.mxu0 0.0
    %723 = vmatprep.subr.mxu0 0.0
    %724 = vmatpush1.msra.mxu0 0.0
    %725 = vmatprep.subr.mxu0 0.0
    %726 = vmatpush1.msra.mxu0 0.0
    %727 = vmatprep.subr.mxu0 0.0
    %728 = vmatpush1.msra.mxu0 0.0
    %729 = vmatprep.subr.mxu0 0.0
    %730 = vmatpush1.msra.mxu0 0.0
    %731 = vmatprep.subr.mxu0 0.0
    %732 = vmatpush1.msra.mxu0 0.0
    %733 = vmatprep.subr.mxu0 0.0
    %734 = vmatpush1.msra.mxu0 0.0
    %735 = vmatprep.subr.mxu0 0.0
    %736 = vmatpush1.msra.mxu0 0.0
    %737 = vmatprep.subr.mxu0 0.0
    %738 = vmatpush1.msra.mxu0 0.0
    %739 = vmatprep.subr.mxu0 0.0
    %740 = vmatpush1.msra.mxu0 0.0
    %741 = vmatprep.subr.mxu0 0.0
    %742 = vmatpush1.msra.mxu0 0.0
    %743 = vmatprep.mubr.f32.mxu0 0.0
    %v744 = vand.u32 %v108, 4294901760
    %745 = vmatmul.mubr.f32.gmra.mrb[0].mxu0 %v744
    %v746 = vpop.f32.mrb[0].mxu0
    %v747 = vadd.f32 %v660, %v746
    %v748 = vpop.f32.mrb[0].mxu0
    %749 = vdwg.mxu0
    %750 = vmatprep.subr.mxu0 0.0
    %v751 = vand.u32 %v75, 4294901760
    %752 = vmatpush1.msra.mxu0 %v751
    %753 = vmatprep.subr.mxu0 0.0
    %v754 = vand.u32 %v76, 4294901760
    %755 = vmatpush1.msra.mxu0 %v754
    %756 = vmatprep.subr.mxu0 0.0
    %v757 = vand.u32 %v77, 4294901760
    %758 = vmatpush1.msra.mxu0 %v757
    %759 = vmatprep.subr.mxu0 0.0
    %v760 = vand.u32 %v78, 4294901760
    %761 = vmatpush1.msra.mxu0 %v760
    %762 = vmatprep.subr.mxu0 0.0
    %v763 = vand.u32 %v79, 4294901760
    %764 = vmatpush1.msra.mxu0 %v763
    %765 = vmatprep.subr.mxu0 0.0
    %v766 = vand.u32 %v80, 4294901760
    %767 = vmatpush1.msra.mxu0 %v766
    %768 = vmatprep.subr.mxu0 0.0
    %v769 = vand.u32 %v81, 4294901760
    %770 = vmatpush1.msra.mxu0 %v769
    %771 = vmatprep.subr.mxu0 0.0
    %v772 = vand.u32 %v82, 4294901760
    %773 = vmatpush1.msra.mxu0 %v772
    %774 = vmatprep.subr.mxu0 0.0
    %v775 = vand.u32 %v83, 4294901760
    %776 = vmatpush1.msra.mxu0 %v775
    %777 = vmatprep.subr.mxu0 0.0
    %v778 = vand.u32 %v84, 4294901760
    %779 = vmatpush1.msra.mxu0 %v778
    %780 = vmatprep.subr.mxu0 0.0
    %v781 = vand.u32 %v85, 4294901760
    %782 = vmatpush1.msra.mxu0 %v781
    %783 = vmatprep.subr.mxu0 0.0
    %v784 = vand.u32 %v86, 4294901760
    %785 = vmatpush1.msra.mxu0 %v784
    %786 = vmatprep.subr.mxu0 0.0
    %v787 = vand.u32 %v87, 4294901760
    %788 = vmatpush1.msra.mxu0 %v787
    %789 = vmatprep.subr.mxu0 0.0
    %v790 = vand.u32 %v88, 4294901760
    %791 = vmatpush1.msra.mxu0 %v790
    %792 = vmatprep.subr.mxu0 0.0
    %v793 = vand.u32 %v89, 4294901760
    %794 = vmatpush1.msra.mxu0 %v793
    %795 = vmatprep.subr.mxu0 0.0
    %v796 = vand.u32 %v90, 4294901760
    %797 = vmatpush1.msra.mxu0 %v796
    %798 = vmatprep.subr.mxu0 0.0
    %799 = vmatpush1.msra.mxu0 0.0
    %800 = vmatprep.subr.mxu0 0.0
    %801 = vmatpush1.msra.mxu0 0.0
    %802 = vmatprep.subr.mxu0 0.0
    %803 = vmatpush1.msra.mxu0 0.0
    %804 = vmatprep.subr.mxu0 0.0
    %805 = vmatpush1.msra.mxu0 0.0
    %806 = vmatprep.subr.mxu0 0.0
    %807 = vmatpush1.msra.mxu0 0.0
    %808 = vmatprep.subr.mxu0 0.0
    %809 = vmatpush1.msra.mxu0 0.0
    %810 = vmatprep.subr.mxu0 0.0
    %811 = vmatpush1.msra.mxu0 0.0
    %812 = vmatprep.subr.mxu0 0.0
    %813 = vmatpush1.msra.mxu0 0.0
    %814 = vmatprep.subr.mxu0 0.0
    %815 = vmatpush1.msra.mxu0 0.0
    %816 = vmatprep.subr.mxu0 0.0
    %817 = vmatpush1.msra.mxu0 0.0
    %818 = vmatprep.subr.mxu0 0.0
    %819 = vmatpush1.msra.mxu0 0.0
    %820 = vmatprep.subr.mxu0 0.0
    %821 = vmatpush1.msra.mxu0 0.0
    %822 = vmatprep.subr.mxu0 0.0
    %823 = vmatpush1.msra.mxu0 0.0
    %824 = vmatprep.subr.mxu0 0.0
    %825 = vmatpush1.msra.mxu0 0.0
    %826 = vmatprep.subr.mxu0 0.0
    %827 = vmatpush1.msra.mxu0 0.0
    %828 = vmatprep.subr.mxu0 0.0
    %829 = vmatpush1.msra.mxu0 0.0
    %830 = vmatprep.mubr.f32.mxu0 0.0
    %v831 = vand.u32 %v107, 4294901760
    %v832 = vsub.f32 %v107, %v831
    %v833 = vand.u32 %v832, 4294901760
    %v834 = vsub.f32 %v832, %v833
    %v835 = vand.u32 %v834, 4294901760
    %836 = vmatmul.mubr.f32.gmra.mrb[0].mxu0 %v835
    %v837 = vpop.f32.mrb[0].mxu0
    %v838 = vadd.f32 %v747, %v837
    %v839 = vpop.f32.mrb[0].mxu0
    %840 = vdwg.mxu0
    %841 = vmatprep.subr.mxu0 0.0
    %v842 = vand.u32 %v75, 4294901760
    %v843 = vsub.f32 %v75, %v842
    %v844 = vand.u32 %v843, 4294901760
    %v845 = vsub.f32 %v843, %v844
    %v846 = vand.u32 %v845, 4294901760
    %847 = vmatpush1.msra.mxu0 %v846
    %848 = vmatprep.subr.mxu0 0.0
    %v849 = vand.u32 %v76, 4294901760
    %v850 = vsub.f32 %v76, %v849
    %v851 = vand.u32 %v850, 4294901760
    %v852 = vsub.f32 %v850, %v851
    %v853 = vand.u32 %v852, 4294901760
    %854 = vmatpush1.msra.mxu0 %v853
    %855 = vmatprep.subr.mxu0 0.0
    %v856 = vand.u32 %v77, 4294901760
    %v857 = vsub.f32 %v77, %v856
    %v858 = vand.u32 %v857, 4294901760
    %v859 = vsub.f32 %v857, %v858
    %v860 = vand.u32 %v859, 4294901760
    %861 = vmatpush1.msra.mxu0 %v860
    %862 = vmatprep.subr.mxu0 0.0
    %v863 = vand.u32 %v78, 4294901760
    %v864 = vsub.f32 %v78, %v863
    %v865 = vand.u32 %v864, 4294901760
    %v866 = vsub.f32 %v864, %v865
    %v867 = vand.u32 %v866, 4294901760
    %868 = vmatpush1.msra.mxu0 %v867
    %869 = vmatprep.subr.mxu0 0.0
    %v870 = vand.u32 %v79, 4294901760
    %v871 = vsub.f32 %v79, %v870
    %v872 = vand.u32 %v871, 4294901760
    %v873 = vsub.f32 %v871, %v872
    %v874 = vand.u32 %v873, 4294901760
    %875 = vmatpush1.msra.mxu0 %v874
    %876 = vmatprep.subr.mxu0 0.0
    %v877 = vand.u32 %v80, 4294901760
    %v878 = vsub.f32 %v80, %v877
    %v879 = vand.u32 %v878, 4294901760
    %v880 = vsub.f32 %v878, %v879
    %v881 = vand.u32 %v880, 4294901760
    %882 = vmatpush1.msra.mxu0 %v881
    %883 = vmatprep.subr.mxu0 0.0
    %v884 = vand.u32 %v81, 4294901760
    %v885 = vsub.f32 %v81, %v884
    %v886 = vand.u32 %v885, 4294901760
    %v887 = vsub.f32 %v885, %v886
    %v888 = vand.u32 %v887, 4294901760
    %889 = vmatpush1.msra.mxu0 %v888
    %890 = vmatprep.subr.mxu0 0.0
    %v891 = vand.u32 %v82, 4294901760
    %v892 = vsub.f32 %v82, %v891
    %v893 = vand.u32 %v892, 4294901760
    %v894 = vsub.f32 %v892, %v893
    %v895 = vand.u32 %v894, 4294901760
    %896 = vmatpush1.msra.mxu0 %v895
    %897 = vmatprep.subr.mxu0 0.0
    %v898 = vand.u32 %v83, 4294901760
    %v899 = vsub.f32 %v83, %v898
    %v900 = vand.u32 %v899, 4294901760
    %v901 = vsub.f32 %v899, %v900
    %v902 = vand.u32 %v901, 4294901760
    %903 = vmatpush1.msra.mxu0 %v902
    %904 = vmatprep.subr.mxu0 0.0
    %v905 = vand.u32 %v84, 4294901760
    %v906 = vsub.f32 %v84, %v905
    %v907 = vand.u32 %v906, 4294901760
    %v908 = vsub.f32 %v906, %v907
    %v909 = vand.u32 %v908, 4294901760
    %910 = vmatpush1.msra.mxu0 %v909
    %911 = vmatprep.subr.mxu0 0.0
    %v912 = vand.u32 %v85, 4294901760
    %v913 = vsub.f32 %v85, %v912
    %v914 = vand.u32 %v913, 4294901760
    %v915 = vsub.f32 %v913, %v914
    %v916 = vand.u32 %v915, 4294901760
    %917 = vmatpush1.msra.mxu0 %v916
    %918 = vmatprep.subr.mxu0 0.0
    %v919 = vand.u32 %v86, 4294901760
    %v920 = vsub.f32 %v86, %v919
    %v921 = vand.u32 %v920, 4294901760
    %v922 = vsub.f32 %v920, %v921
    %v923 = vand.u32 %v922, 4294901760
    %924 = vmatpush1.msra.mxu0 %v923
    %925 = vmatprep.subr.mxu0 0.0
    %v926 = vand.u32 %v87, 4294901760
    %v927 = vsub.f32 %v87, %v926
    %v928 = vand.u32 %v927, 4294901760
    %v929 = vsub.f32 %v927, %v928
    %v930 = vand.u32 %v929, 4294901760
    %931 = vmatpush1.msra.mxu0 %v930
    %932 = vmatprep.subr.mxu0 0.0
    %v933 = vand.u32 %v88, 4294901760
    %v934 = vsub.f32 %v88, %v933
    %v935 = vand.u32 %v934, 4294901760
    %v936 = vsub.f32 %v934, %v935
    %v937 = vand.u32 %v936, 4294901760
    %938 = vmatpush1.msra.mxu0 %v937
    %939 = vmatprep.subr.mxu0 0.0
    %v940 = vand.u32 %v89, 4294901760
    %v941 = vsub.f32 %v89, %v940
    %v942 = vand.u32 %v941, 4294901760
    %v943 = vsub.f32 %v941, %v942
    %v944 = vand.u32 %v943, 4294901760
    %945 = vmatpush1.msra.mxu0 %v944
    %946 = vmatprep.subr.mxu0 0.0
    %v947 = vand.u32 %v90, 4294901760
    %v948 = vsub.f32 %v90, %v947
    %v949 = vand.u32 %v948, 4294901760
    %v950 = vsub.f32 %v948, %v949
    %v951 = vand.u32 %v950, 4294901760
    %952 = vmatpush1.msra.mxu0 %v951
    %953 = vmatprep.subr.mxu0 0.0
    %954 = vmatpush1.msra.mxu0 0.0
    %955 = vmatprep.subr.mxu0 0.0
    %956 = vmatpush1.msra.mxu0 0.0
    %957 = vmatprep.subr.mxu0 0.0
    %958 = vmatpush1.msra.mxu0 0.0
    %959 = vmatprep.subr.mxu0 0.0
    %960 = vmatpush1.msra.mxu0 0.0
    %961 = vmatprep.subr.mxu0 0.0
    %962 = vmatpush1.msra.mxu0 0.0
    %963 = vmatprep.subr.mxu0 0.0
    %964 = vmatpush1.msra.mxu0 0.0
    %965 = vmatprep.subr.mxu0 0.0
    %966 = vmatpush1.msra.mxu0 0.0
    %967 = vmatprep.subr.mxu0 0.0
    %968 = vmatpush1.msra.mxu0 0.0
    %969 = vmatprep.subr.mxu0 0.0
    %970 = vmatpush1.msra.mxu0 0.0
    %971 = vmatprep.subr.mxu0 0.0
    %972 = vmatpush1.msra.mxu0 0.0
    %973 = vmatprep.subr.mxu0 0.0
    %974 = vmatpush1.msra.mxu0 0.0
    %975 = vmatprep.subr.mxu0 0.0
    %976 = vmatpush1.msra.mxu0 0.0
    %977 = vmatprep.subr.mxu0 0.0
    %978 = vmatpush1.msra.mxu0 0.0
    %979 = vmatprep.subr.mxu0 0.0
    %980 = vmatpush1.msra.mxu0 0.0
    %981 = vmatprep.subr.mxu0 0.0
    %982 = vmatpush1.msra.mxu0 0.0
    %983 = vmatprep.subr.mxu0 0.0
    %984 = vmatpush1.msra.mxu0 0.0
    %985 = vmatprep.mubr.f32.mxu0 0.0
    %v986 = vand.u32 %v107, 4294901760
    %987 = vmatmul.mubr.f32.gmra.mrb[0].mxu0 %v986
    %v988 = vpop.f32.mrb[0].mxu0
    %v989 = vadd.f32 %v838, %v988
    %v990 = vpop.f32.mrb[0].mxu0
    %991 = vdwg.mxu0
    %992 = vmatprep.subr.mxu0 0.0
    %v993 = vand.u32 %v75, 4294901760
    %v994 = vsub.f32 %v75, %v993
    %995 = vmatpush1.msra.mxu0 %v994
    %996 = vmatprep.subr.mxu0 0.0
    %v997 = vand.u32 %v76, 4294901760
    %v998 = vsub.f32 %v76, %v997
    %999 = vmatpush1.msra.mxu0 %v998
    %1000 = vmatprep.subr.mxu0 0.0
    %v1001 = vand.u32 %v77, 4294901760
    %v1002 = vsub.f32 %v77, %v1001
    %1003 = vmatpush1.msra.mxu0 %v1002
    %1004 = vmatprep.subr.mxu0 0.0
    %v1005 = vand.u32 %v78, 4294901760
    %v1006 = vsub.f32 %v78, %v1005
    %1007 = vmatpush1.msra.mxu0 %v1006
    %1008 = vmatprep.subr.mxu0 0.0
    %v1009 = vand.u32 %v79, 4294901760
    %v1010 = vsub.f32 %v79, %v1009
    %1011 = vmatpush1.msra.mxu0 %v1010
    %1012 = vmatprep.subr.mxu0 0.0
    %v1013 = vand.u32 %v80, 4294901760
    %v1014 = vsub.f32 %v80, %v1013
    %1015 = vmatpush1.msra.mxu0 %v1014
    %1016 = vmatprep.subr.mxu0 0.0
    %v1017 = vand.u32 %v81, 4294901760
    %v1018 = vsub.f32 %v81, %v1017
    %1019 = vmatpush1.msra.mxu0 %v1018
    %1020 = vmatprep.subr.mxu0 0.0
    %v1021 = vand.u32 %v82, 4294901760
    %v1022 = vsub.f32 %v82, %v1021
    %1023 = vmatpush1.msra.mxu0 %v1022
    %1024 = vmatprep.subr.mxu0 0.0
    %v1025 = vand.u32 %v83, 4294901760
    %v1026 = vsub.f32 %v83, %v1025
    %1027 = vmatpush1.msra.mxu0 %v1026
    %1028 = vmatprep.subr.mxu0 0.0
    %v1029 = vand.u32 %v84, 4294901760
    %v1030 = vsub.f32 %v84, %v1029
    %1031 = vmatpush1.msra.mxu0 %v1030
    %1032 = vmatprep.subr.mxu0 0.0
    %v1033 = vand.u32 %v85, 4294901760
    %v1034 = vsub.f32 %v85, %v1033
    %1035 = vmatpush1.msra.mxu0 %v1034
    %1036 = vmatprep.subr.mxu0 0.0
    %v1037 = vand.u32 %v86, 4294901760
    %v1038 = vsub.f32 %v86, %v1037
    %1039 = vmatpush1.msra.mxu0 %v1038
    %1040 = vmatprep.subr.mxu0 0.0
    %v1041 = vand.u32 %v87, 4294901760
    %v1042 = vsub.f32 %v87, %v1041
    %1043 = vmatpush1.msra.mxu0 %v1042
    %1044 = vmatprep.subr.mxu0 0.0
    %v1045 = vand.u32 %v88, 4294901760
    %v1046 = vsub.f32 %v88, %v1045
    %1047 = vmatpush1.msra.mxu0 %v1046
    %1048 = vmatprep.subr.mxu0 0.0
    %v1049 = vand.u32 %v89, 4294901760
    %v1050 = vsub.f32 %v89, %v1049
    %1051 = vmatpush1.msra.mxu0 %v1050
    %1052 = vmatprep.subr.mxu0 0.0
    %v1053 = vand.u32 %v90, 4294901760
    %v1054 = vsub.f32 %v90, %v1053
    %1055 = vmatpush1.msra.mxu0 %v1054
    %1056 = vmatprep.subr.mxu0 0.0
    %1057 = vmatpush1.msra.mxu0 0.0
    %1058 = vmatprep.subr.mxu0 0.0
    %1059 = vmatpush1.msra.mxu0 0.0
    %1060 = vmatprep.subr.mxu0 0.0
    %1061 = vmatpush1.msra.mxu0 0.0
    %1062 = vmatprep.subr.mxu0 0.0
    %1063 = vmatpush1.msra.mxu0 0.0
    %1064 = vmatprep.subr.mxu0 0.0
    %1065 = vmatpush1.msra.mxu0 0.0
    %1066 = vmatprep.subr.mxu0 0.0
    %1067 = vmatpush1.msra.mxu0 0.0
    %1068 = vmatprep.subr.mxu0 0.0
    %1069 = vmatpush1.msra.mxu0 0.0
    %1070 = vmatprep.subr.mxu0 0.0
    %1071 = vmatpush1.msra.mxu0 0.0
    %1072 = vmatprep.subr.mxu0 0.0
    %1073 = vmatpush1.msra.mxu0 0.0
    %1074 = vmatprep.subr.mxu0 0.0
    %1075 = vmatpush1.msra.mxu0 0.0
    %1076 = vmatprep.subr.mxu0 0.0
    %1077 = vmatpush1.msra.mxu0 0.0
    %1078 = vmatprep.subr.mxu0 0.0
    %1079 = vmatpush1.msra.mxu0 0.0
    %1080 = vmatprep.subr.mxu0 0.0
    %1081 = vmatpush1.msra.mxu0 0.0
    %1082 = vmatprep.subr.mxu0 0.0
    %1083 = vmatpush1.msra.mxu0 0.0
    %1084 = vmatprep.subr.mxu0 0.0
    %1085 = vmatpush1.msra.mxu0 0.0
    %1086 = vmatprep.subr.mxu0 0.0
    %1087 = vmatpush1.msra.mxu0 0.0
    %1088 = vmatprep.mubr.f32.mxu0 0.0
    %v1089 = vand.u32 %v107, 4294901760
    %v1090 = vsub.f32 %v107, %v1089
    %1091 = vmatmul.mubr.f32.gmra.mrb[0].mxu0 %v1090
    %v1092 = vpop.f32.mrb[0].mxu0
    %v1093 = vadd.f32 %v989, %v1092
    %v1094 = vpop.f32.mrb[0].mxu0
    %1095 = vdwg.mxu0
    %1096 = vmatprep.subr.mxu0 0.0
    %v1097 = vand.u32 %v75, 4294901760
    %1098 = vmatpush1.msra.mxu0 %v1097
    %1099 = vmatprep.subr.mxu0 0.0
    %v1100 = vand.u32 %v76, 4294901760
    %1101 = vmatpush1.msra.mxu0 %v1100
    %1102 = vmatprep.subr.mxu0 0.0
    %v1103 = vand.u32 %v77, 4294901760
    %1104 = vmatpush1.msra.mxu0 %v1103
    %1105 = vmatprep.subr.mxu0 0.0
    %v1106 = vand.u32 %v78, 4294901760
    %1107 = vmatpush1.msra.mxu0 %v1106
    %1108 = vmatprep.subr.mxu0 0.0
    %v1109 = vand.u32 %v79, 4294901760
    %1110 = vmatpush1.msra.mxu0 %v1109
    %1111 = vmatprep.subr.mxu0 0.0
    %v1112 = vand.u32 %v80, 4294901760
    %1113 = vmatpush1.msra.mxu0 %v1112
    %1114 = vmatprep.subr.mxu0 0.0
    %v1115 = vand.u32 %v81, 4294901760
    %1116 = vmatpush1.msra.mxu0 %v1115
    %1117 = vmatprep.subr.mxu0 0.0
    %v1118 = vand.u32 %v82, 4294901760
    %1119 = vmatpush1.msra.mxu0 %v1118
    %1120 = vmatprep.subr.mxu0 0.0
    %v1121 = vand.u32 %v83, 4294901760
    %1122 = vmatpush1.msra.mxu0 %v1121
    %1123 = vmatprep.subr.mxu0 0.0
    %v1124 = vand.u32 %v84, 4294901760
    %1125 = vmatpush1.msra.mxu0 %v1124
    %1126 = vmatprep.subr.mxu0 0.0
    %v1127 = vand.u32 %v85, 4294901760
    %1128 = vmatpush1.msra.mxu0 %v1127
    %1129 = vmatprep.subr.mxu0 0.0
    %v1130 = vand.u32 %v86, 4294901760
    %1131 = vmatpush1.msra.mxu0 %v1130
    %1132 = vmatprep.subr.mxu0 0.0
    %v1133 = vand.u32 %v87, 4294901760
    %1134 = vmatpush1.msra.mxu0 %v1133
    %1135 = vmatprep.subr.mxu0 0.0
    %v1136 = vand.u32 %v88, 4294901760
    %1137 = vmatpush1.msra.mxu0 %v1136
    %1138 = vmatprep.subr.mxu0 0.0
    %v1139 = vand.u32 %v89, 4294901760
    %1140 = vmatpush1.msra.mxu0 %v1139
    %1141 = vmatprep.subr.mxu0 0.0
    %v1142 = vand.u32 %v90, 4294901760
    %1143 = vmatpush1.msra.mxu0 %v1142
    %1144 = vmatprep.subr.mxu0 0.0
    %1145 = vmatpush1.msra.mxu0 0.0
    %1146 = vmatprep.subr.mxu0 0.0
    %1147 = vmatpush1.msra.mxu0 0.0
    %1148 = vmatprep.subr.mxu0 0.0
    %1149 = vmatpush1.msra.mxu0 0.0
    %1150 = vmatprep.subr.mxu0 0.0
    %1151 = vmatpush1.msra.mxu0 0.0
    %1152 = vmatprep.subr.mxu0 0.0
    %1153 = vmatpush1.msra.mxu0 0.0
    %1154 = vmatprep.subr.mxu0 0.0
    %1155 = vmatpush1.msra.mxu0 0.0
    %1156 = vmatprep.subr.mxu0 0.0
    %1157 = vmatpush1.msra.mxu0 0.0
    %1158 = vmatprep.subr.mxu0 0.0
    %1159 = vmatpush1.msra.mxu0 0.0
    %1160 = vmatprep.subr.mxu0 0.0
    %1161 = vmatpush1.msra.mxu0 0.0
    %1162 = vmatprep.subr.mxu0 0.0
    %1163 = vmatpush1.msra.mxu0 0.0
    %1164 = vmatprep.subr.mxu0 0.0
    %1165 = vmatpush1.msra.mxu0 0.0
    %1166 = vmatprep.subr.mxu0 0.0
    %1167 = vmatpush1.msra.mxu0 0.0
    %1168 = vmatprep.subr.mxu0 0.0
    %1169 = vmatpush1.msra.mxu0 0.0
    %1170 = vmatprep.subr.mxu0 0.0
    %1171 = vmatpush1.msra.mxu0 0.0
    %1172 = vmatprep.subr.mxu0 0.0
    %1173 = vmatpush1.msra.mxu0 0.0
    %1174 = vmatprep.subr.mxu0 0.0
    %1175 = vmatpush1.msra.mxu0 0.0
    %1176 = vmatprep.mubr.f32.mxu0 0.0
    %v1177 = vand.u32 %v107, 4294901760
    %v1178 = vsub.f32 %v107, %v1177
    %v1179 = vand.u32 %v1178, 4294901760
    %1180 = vmatmul.mubr.f32.gmra.mrb[0].mxu0 %v1179
    %v1181 = vpop.f32.mrb[0].mxu0
    %v1182 = vadd.f32 %v1093, %v1181
    %v1183 = vpop.f32.mrb[0].mxu0
    %1184 = vdwg.mxu0
    %1185 = vmatprep.subr.mxu0 0.0
    %v1186 = vand.u32 %v75, 4294901760
    %v1187 = vsub.f32 %v75, %v1186
    %v1188 = vand.u32 %v1187, 4294901760
    %1189 = vmatpush1.msra.mxu0 %v1188
    %1190 = vmatprep.subr.mxu0 0.0
    %v1191 = vand.u32 %v76, 4294901760
    %v1192 = vsub.f32 %v76, %v1191
    %v1193 = vand.u32 %v1192, 4294901760
    %1194 = vmatpush1.msra.mxu0 %v1193
    %1195 = vmatprep.subr.mxu0 0.0
    %v1196 = vand.u32 %v77, 4294901760
    %v1197 = vsub.f32 %v77, %v1196
    %v1198 = vand.u32 %v1197, 4294901760
    %1199 = vmatpush1.msra.mxu0 %v1198
    %1200 = vmatprep.subr.mxu0 0.0
    %v1201 = vand.u32 %v78, 4294901760
    %v1202 = vsub.f32 %v78, %v1201
    %v1203 = vand.u32 %v1202, 4294901760
    %1204 = vmatpush1.msra.mxu0 %v1203
    %1205 = vmatprep.subr.mxu0 0.0
    %v1206 = vand.u32 %v79, 4294901760
    %v1207 = vsub.f32 %v79, %v1206
    %v1208 = vand.u32 %v1207, 4294901760
    %1209 = vmatpush1.msra.mxu0 %v1208
    %1210 = vmatprep.subr.mxu0 0.0
    %v1211 = vand.u32 %v80, 4294901760
    %v1212 = vsub.f32 %v80, %v1211
    %v1213 = vand.u32 %v1212, 4294901760
    %1214 = vmatpush1.msra.mxu0 %v1213
    %1215 = vmatprep.subr.mxu0 0.0
    %v1216 = vand.u32 %v81, 4294901760
    %v1217 = vsub.f32 %v81, %v1216
    %v1218 = vand.u32 %v1217, 4294901760
    %1219 = vmatpush1.msra.mxu0 %v1218
    %1220 = vmatprep.subr.mxu0 0.0
    %v1221 = vand.u32 %v82, 4294901760
    %v1222 = vsub.f32 %v82, %v1221
    %v1223 = vand.u32 %v1222, 4294901760
    %1224 = vmatpush1.msra.mxu0 %v1223
    %1225 = vmatprep.subr.mxu0 0.0
    %v1226 = vand.u32 %v83, 4294901760
    %v1227 = vsub.f32 %v83, %v1226
    %v1228 = vand.u32 %v1227, 4294901760
    %1229 = vmatpush1.msra.mxu0 %v1228
    %1230 = vmatprep.subr.mxu0 0.0
    %v1231 = vand.u32 %v84, 4294901760
    %v1232 = vsub.f32 %v84, %v1231
    %v1233 = vand.u32 %v1232, 4294901760
    %1234 = vmatpush1.msra.mxu0 %v1233
    %1235 = vmatprep.subr.mxu0 0.0
    %v1236 = vand.u32 %v85, 4294901760
    %v1237 = vsub.f32 %v85, %v1236
    %v1238 = vand.u32 %v1237, 4294901760
    %1239 = vmatpush1.msra.mxu0 %v1238
    %1240 = vmatprep.subr.mxu0 0.0
    %v1241 = vand.u32 %v86, 4294901760
    %v1242 = vsub.f32 %v86, %v1241
    %v1243 = vand.u32 %v1242, 4294901760
    %1244 = vmatpush1.msra.mxu0 %v1243
    %1245 = vmatprep.subr.mxu0 0.0
    %v1246 = vand.u32 %v87, 4294901760
    %v1247 = vsub.f32 %v87, %v1246
    %v1248 = vand.u32 %v1247, 4294901760
    %1249 = vmatpush1.msra.mxu0 %v1248
    %1250 = vmatprep.subr.mxu0 0.0
    %v1251 = vand.u32 %v88, 4294901760
    %v1252 = vsub.f32 %v88, %v1251
    %v1253 = vand.u32 %v1252, 4294901760
    %1254 = vmatpush1.msra.mxu0 %v1253
    %1255 = vmatprep.subr.mxu0 0.0
    %v1256 = vand.u32 %v89, 4294901760
    %v1257 = vsub.f32 %v89, %v1256
    %v1258 = vand.u32 %v1257, 4294901760
    %1259 = vmatpush1.msra.mxu0 %v1258
    %1260 = vmatprep.subr.mxu0 0.0
    %v1261 = vand.u32 %v90, 4294901760
    %v1262 = vsub.f32 %v90, %v1261
    %v1263 = vand.u32 %v1262, 4294901760
    %1264 = vmatpush1.msra.mxu0 %v1263
    %1265 = vmatprep.subr.mxu0 0.0
    %1266 = vmatpush1.msra.mxu0 0.0
    %1267 = vmatprep.subr.mxu0 0.0
    %1268 = vmatpush1.msra.mxu0 0.0
    %1269 = vmatprep.subr.mxu0 0.0
    %1270 = vmatpush1.msra.mxu0 0.0
    %1271 = vmatprep.subr.mxu0 0.0
    %1272 = vmatpush1.msra.mxu0 0.0
    %1273 = vmatprep.subr.mxu0 0.0
    %1274 = vmatpush1.msra.mxu0 0.0
    %1275 = vmatprep.subr.mxu0 0.0
    %1276 = vmatpush1.msra.mxu0 0.0
    %1277 = vmatprep.subr.mxu0 0.0
    %1278 = vmatpush1.msra.mxu0 0.0
    %1279 = vmatprep.subr.mxu0 0.0
    %1280 = vmatpush1.msra.mxu0 0.0
    %1281 = vmatprep.subr.mxu0 0.0
    %1282 = vmatpush1.msra.mxu0 0.0
    %1283 = vmatprep.subr.mxu0 0.0
    %1284 = vmatpush1.msra.mxu0 0.0
    %1285 = vmatprep.subr.mxu0 0.0
    %1286 = vmatpush1.msra.mxu0 0.0
    %1287 = vmatprep.subr.mxu0 0.0
    %1288 = vmatpush1.msra.mxu0 0.0
    %1289 = vmatprep.subr.mxu0 0.0
    %1290 = vmatpush1.msra.mxu0 0.0
    %1291 = vmatprep.subr.mxu0 0.0
    %1292 = vmatpush1.msra.mxu0 0.0
    %1293 = vmatprep.subr.mxu0 0.0
    %1294 = vmatpush1.msra.mxu0 0.0
    %1295 = vmatprep.subr.mxu0 0.0
    %1296 = vmatpush1.msra.mxu0 0.0
    %1297 = vmatprep.mubr.f32.mxu0 0.0
    %v1298 = vand.u32 %v107, 4294901760
    %1299 = vmatmul.mubr.f32.gmra.mrb[0].mxu0 %v1298
    %v1300 = vpop.f32.mrb[0].mxu0
    %v1301 = vadd.f32 %v1182, %v1300
    %v1302 = vpop.f32.mrb[0].mxu0
    %1303 = vdwg.mxu0
    %1304 = vmatprep.subr.mxu0 0.0
    %v1305 = vand.u32 %v75, 4294901760
    %1306 = vmatpush1.msra.mxu0 %v1305
    %1307 = vmatprep.subr.mxu0 0.0
    %v1308 = vand.u32 %v76, 4294901760
    %1309 = vmatpush1.msra.mxu0 %v1308
    %1310 = vmatprep.subr.mxu0 0.0
    %v1311 = vand.u32 %v77, 4294901760
    %1312 = vmatpush1.msra.mxu0 %v1311
    %1313 = vmatprep.subr.mxu0 0.0
    %v1314 = vand.u32 %v78, 4294901760
    %1315 = vmatpush1.msra.mxu0 %v1314
    %1316 = vmatprep.subr.mxu0 0.0
    %v1317 = vand.u32 %v79, 4294901760
    %1318 = vmatpush1.msra.mxu0 %v1317
    %1319 = vmatprep.subr.mxu0 0.0
    %v1320 = vand.u32 %v80, 4294901760
    %1321 = vmatpush1.msra.mxu0 %v1320
    %1322 = vmatprep.subr.mxu0 0.0
    %v1323 = vand.u32 %v81, 4294901760
    %1324 = vmatpush1.msra.mxu0 %v1323
    %1325 = vmatprep.subr.mxu0 0.0
    %v1326 = vand.u32 %v82, 4294901760
    %1327 = vmatpush1.msra.mxu0 %v1326
    %1328 = vmatprep.subr.mxu0 0.0
    %v1329 = vand.u32 %v83, 4294901760
    %1330 = vmatpush1.msra.mxu0 %v1329
    %1331 = vmatprep.subr.mxu0 0.0
    %v1332 = vand.u32 %v84, 4294901760
    %1333 = vmatpush1.msra.mxu0 %v1332
    %1334 = vmatprep.subr.mxu0 0.0
    %v1335 = vand.u32 %v85, 4294901760
    %1336 = vmatpush1.msra.mxu0 %v1335
    %1337 = vmatprep.subr.mxu0 0.0
    %v1338 = vand.u32 %v86, 4294901760
    %1339 = vmatpush1.msra.mxu0 %v1338
    %1340 = vmatprep.subr.mxu0 0.0
    %v1341 = vand.u32 %v87, 4294901760
    %1342 = vmatpush1.msra.mxu0 %v1341
    %1343 = vmatprep.subr.mxu0 0.0
    %v1344 = vand.u32 %v88, 4294901760
    %1345 = vmatpush1.msra.mxu0 %v1344
    %1346 = vmatprep.subr.mxu0 0.0
    %v1347 = vand.u32 %v89, 4294901760
    %1348 = vmatpush1.msra.mxu0 %v1347
    %1349 = vmatprep.subr.mxu0 0.0
    %v1350 = vand.u32 %v90, 4294901760
    %1351 = vmatpush1.msra.mxu0 %v1350
    %1352 = vmatprep.subr.mxu0 0.0
    %1353 = vmatpush1.msra.mxu0 0.0
    %1354 = vmatprep.subr.mxu0 0.0
    %1355 = vmatpush1.msra.mxu0 0.0
    %1356 = vmatprep.subr.mxu0 0.0
    %1357 = vmatpush1.msra.mxu0 0.0
    %1358 = vmatprep.subr.mxu0 0.0
    %1359 = vmatpush1.msra.mxu0 0.0
    %1360 = vmatprep.subr.mxu0 0.0
    %1361 = vmatpush1.msra.mxu0 0.0
    %1362 = vmatprep.subr.mxu0 0.0
    %1363 = vmatpush1.msra.mxu0 0.0
    %1364 = vmatprep.subr.mxu0 0.0
    %1365 = vmatpush1.msra.mxu0 0.0
    %1366 = vmatprep.subr.mxu0 0.0
    %1367 = vmatpush1.msra.mxu0 0.0
    %1368 = vmatprep.subr.mxu0 0.0
    %1369 = vmatpush1.msra.mxu0 0.0
    %1370 = vmatprep.subr.mxu0 0.0
    %1371 = vmatpush1.msra.mxu0 0.0
    %1372 = vmatprep.subr.mxu0 0.0
    %1373 = vmatpush1.msra.mxu0 0.0
    %1374 = vmatprep.subr.mxu0 0.0
    %1375 = vmatpush1.msra.mxu0 0.0
    %1376 = vmatprep.subr.mxu0 0.0
    %1377 = vmatpush1.msra.mxu0 0.0
    %1378 = vmatprep.subr.mxu0 0.0
    %1379 = vmatpush1.msra.mxu0 0.0
    %1380 = vmatprep.subr.mxu0 0.0
    %1381 = vmatpush1.msra.mxu0 0.0
    %1382 = vmatprep.subr.mxu0 0.0
    %1383 = vmatpush1.msra.mxu0 0.0
    %1384 = vmatprep.mubr.f32.mxu0 0.0
    %v1385 = vand.u32 %v107, 4294901760
    %1386 = vmatmul.mubr.f32.gmra.mrb[0].mxu0 %v1385
    %v1387 = vpop.f32.mrb[0].mxu0
    %v1388 = vadd.f32 %v1301, %v1387
    %v1389 = vpop.f32.mrb[0].mxu0
    %1390 = vdwg.mxu0
    %1391 = vst [vmem:[#allocation10] sm:$0xff] %v1388
    %v1392 = vld [vmem:[#allocation2 + $0x8] sm:$0xff]
    %v1393 = vld [vmem:[#allocation5] sm:$0xff]
    %1394 = vmatprep.subr.mxu0 0.0
    %v1395 = vand.u32 %v91, 4294901760
    %1396 = vmatpush1.msra.mxu0 %v1395
    %1397 = vmatprep.subr.mxu0 0.0
    %v1398 = vand.u32 %v92, 4294901760
    %1399 = vmatpush1.msra.mxu0 %v1398
    %1400 = vmatprep.subr.mxu0 0.0
    %v1401 = vand.u32 %v93, 4294901760
    %1402 = vmatpush1.msra.mxu0 %v1401
    %1403 = vmatprep.subr.mxu0 0.0
    %v1404 = vand.u32 %v94, 4294901760
    %1405 = vmatpush1.msra.mxu0 %v1404
    %1406 = vmatprep.subr.mxu0 0.0
    %v1407 = vand.u32 %v95, 4294901760
    %1408 = vmatpush1.msra.mxu0 %v1407
    %1409 = vmatprep.subr.mxu0 0.0
    %v1410 = vand.u32 %v96, 4294901760
    %1411 = vmatpush1.msra.mxu0 %v1410
    %1412 = vmatprep.subr.mxu0 0.0
    %v1413 = vand.u32 %v97, 4294901760
    %1414 = vmatpush1.msra.mxu0 %v1413
    %1415 = vmatprep.subr.mxu0 0.0
    %v1416 = vand.u32 %v98, 4294901760
    %1417 = vmatpush1.msra.mxu0 %v1416
    %1418 = vmatprep.subr.mxu0 0.0
    %v1419 = vand.u32 %v99, 4294901760
    %1420 = vmatpush1.msra.mxu0 %v1419
    %1421 = vmatprep.subr.mxu0 0.0
    %v1422 = vand.u32 %v100, 4294901760
    %1423 = vmatpush1.msra.mxu0 %v1422
    %1424 = vmatprep.subr.mxu0 0.0
    %v1425 = vand.u32 %v101, 4294901760
    %1426 = vmatpush1.msra.mxu0 %v1425
    %1427 = vmatprep.subr.mxu0 0.0
    %v1428 = vand.u32 %v102, 4294901760
    %1429 = vmatpush1.msra.mxu0 %v1428
    %1430 = vmatprep.subr.mxu0 0.0
    %v1431 = vand.u32 %v103, 4294901760
    %1432 = vmatpush1.msra.mxu0 %v1431
    %1433 = vmatprep.subr.mxu0 0.0
    %v1434 = vand.u32 %v104, 4294901760
    %1435 = vmatpush1.msra.mxu0 %v1434
    %1436 = vmatprep.subr.mxu0 0.0
    %v1437 = vand.u32 %v105, 4294901760
    %1438 = vmatpush1.msra.mxu0 %v1437
    %1439 = vmatprep.subr.mxu0 0.0
    %v1440 = vand.u32 %v106, 4294901760
    %1441 = vmatpush1.msra.mxu0 %v1440
    %1442 = vmatprep.subr.mxu0 0.0
    %1443 = vmatpush1.msra.mxu0 0.0
    %1444 = vmatprep.subr.mxu0 0.0
    %1445 = vmatpush1.msra.mxu0 0.0
    %1446 = vmatprep.subr.mxu0 0.0
    %1447 = vmatpush1.msra.mxu0 0.0
    %1448 = vmatprep.subr.mxu0 0.0
    %1449 = vmatpush1.msra.mxu0 0.0
    %1450 = vmatprep.subr.mxu0 0.0
    %1451 = vmatpush1.msra.mxu0 0.0
    %1452 = vmatprep.subr.mxu0 0.0
    %1453 = vmatpush1.msra.mxu0 0.0
    %1454 = vmatprep.subr.mxu0 0.0
    %1455 = vmatpush1.msra.mxu0 0.0
    %1456 = vmatprep.subr.mxu0 0.0
    %1457 = vmatpush1.msra.mxu0 0.0
    %1458 = vmatprep.subr.mxu0 0.0
    %1459 = vmatpush1.msra.mxu0 0.0
    %1460 = vmatprep.subr.mxu0 0.0
    %1461 = vmatpush1.msra.mxu0 0.0
    %1462 = vmatprep.subr.mxu0 0.0
    %1463 = vmatpush1.msra.mxu0 0.0
    %1464 = vmatprep.subr.mxu0 0.0
    %1465 = vmatpush1.msra.mxu0 0.0
    %1466 = vmatprep.subr.mxu0 0.0
    %1467 = vmatpush1.msra.mxu0 0.0
    %1468 = vmatprep.subr.mxu0 0.0
    %1469 = vmatpush1.msra.mxu0 0.0
    %1470 = vmatprep.subr.mxu0 0.0
    %1471 = vmatpush1.msra.mxu0 0.0
    %1472 = vmatprep.subr.mxu0 0.0
    %1473 = vmatpush1.msra.mxu0 0.0
    %1474 = vmatprep.mubr.f32.mxu0 0.0
    %v1475 = vand.u32 %v1393, 4294901760
    %v1476 = vsub.f32 %v1393, %v1475
    %v1477 = vand.u32 %v1476, 4294901760
    %v1478 = vsub.f32 %v1476, %v1477
    %v1479 = vand.u32 %v1478, 4294901760
    %1480 = vmatmul.mubr.f32.gmra.mrb[0].mxu0 %v1479
    %v1481 = vpop.f32.mrb[0].mxu0
    %v1482 = vadd.f32 0.0, %v1481
    %v1483 = vpop.f32.mrb[0].mxu0
    %1484 = vdwg.mxu0
    %1485 = vmatprep.subr.mxu0 0.0
    %v1486 = vand.u32 %v91, 4294901760
    %v1487 = vsub.f32 %v91, %v1486
    %v1488 = vand.u32 %v1487, 4294901760
    %v1489 = vsub.f32 %v1487, %v1488
    %v1490 = vand.u32 %v1489, 4294901760
    %1491 = vmatpush1.msra.mxu0 %v1490
    %1492 = vmatprep.subr.mxu0 0.0
    %v1493 = vand.u32 %v92, 4294901760
    %v1494 = vsub.f32 %v92, %v1493
    %v1495 = vand.u32 %v1494, 4294901760
    %v1496 = vsub.f32 %v1494, %v1495
    %v1497 = vand.u32 %v1496, 4294901760
    %1498 = vmatpush1.msra.mxu0 %v1497
    %1499 = vmatprep.subr.mxu0 0.0
    %v1500 = vand.u32 %v93, 4294901760
    %v1501 = vsub.f32 %v93, %v1500
    %v1502 = vand.u32 %v1501, 4294901760
    %v1503 = vsub.f32 %v1501, %v1502
    %v1504 = vand.u32 %v1503, 4294901760
    %1505 = vmatpush1.msra.mxu0 %v1504
    %1506 = vmatprep.subr.mxu0 0.0
    %v1507 = vand.u32 %v94, 4294901760
    %v1508 = vsub.f32 %v94, %v1507
    %v1509 = vand.u32 %v1508, 4294901760
    %v1510 = vsub.f32 %v1508, %v1509
    %v1511 = vand.u32 %v1510, 4294901760
    %1512 = vmatpush1.msra.mxu0 %v1511
    %1513 = vmatprep.subr.mxu0 0.0
    %v1514 = vand.u32 %v95, 4294901760
    %v1515 = vsub.f32 %v95, %v1514
    %v1516 = vand.u32 %v1515, 4294901760
    %v1517 = vsub.f32 %v1515, %v1516
    %v1518 = vand.u32 %v1517, 4294901760
    %1519 = vmatpush1.msra.mxu0 %v1518
    %1520 = vmatprep.subr.mxu0 0.0
    %v1521 = vand.u32 %v96, 4294901760
    %v1522 = vsub.f32 %v96, %v1521
    %v1523 = vand.u32 %v1522, 4294901760
    %v1524 = vsub.f32 %v1522, %v1523
    %v1525 = vand.u32 %v1524, 4294901760
    %1526 = vmatpush1.msra.mxu0 %v1525
    %1527 = vmatprep.subr.mxu0 0.0
    %v1528 = vand.u32 %v97, 4294901760
    %v1529 = vsub.f32 %v97, %v1528
    %v1530 = vand.u32 %v1529, 4294901760
    %v1531 = vsub.f32 %v1529, %v1530
    %v1532 = vand.u32 %v1531, 4294901760
    %1533 = vmatpush1.msra.mxu0 %v1532
    %1534 = vmatprep.subr.mxu0 0.0
    %v1535 = vand.u32 %v98, 4294901760
    %v1536 = vsub.f32 %v98, %v1535
    %v1537 = vand.u32 %v1536, 4294901760
    %v1538 = vsub.f32 %v1536, %v1537
    %v1539 = vand.u32 %v1538, 4294901760
    %1540 = vmatpush1.msra.mxu0 %v1539
    %1541 = vmatprep.subr.mxu0 0.0
    %v1542 = vand.u32 %v99, 4294901760
    %v1543 = vsub.f32 %v99, %v1542
    %v1544 = vand.u32 %v1543, 4294901760
    %v1545 = vsub.f32 %v1543, %v1544
    %v1546 = vand.u32 %v1545, 4294901760
    %1547 = vmatpush1.msra.mxu0 %v1546
    %1548 = vmatprep.subr.mxu0 0.0
    %v1549 = vand.u32 %v100, 4294901760
    %v1550 = vsub.f32 %v100, %v1549
    %v1551 = vand.u32 %v1550, 4294901760
    %v1552 = vsub.f32 %v1550, %v1551
    %v1553 = vand.u32 %v1552, 4294901760
    %1554 = vmatpush1.msra.mxu0 %v1553
    %1555 = vmatprep.subr.mxu0 0.0
    %v1556 = vand.u32 %v101, 4294901760
    %v1557 = vsub.f32 %v101, %v1556
    %v1558 = vand.u32 %v1557, 4294901760
    %v1559 = vsub.f32 %v1557, %v1558
    %v1560 = vand.u32 %v1559, 4294901760
    %1561 = vmatpush1.msra.mxu0 %v1560
    %1562 = vmatprep.subr.mxu0 0.0
    %v1563 = vand.u32 %v102, 4294901760
    %v1564 = vsub.f32 %v102, %v1563
    %v1565 = vand.u32 %v1564, 4294901760
    %v1566 = vsub.f32 %v1564, %v1565
    %v1567 = vand.u32 %v1566, 4294901760
    %1568 = vmatpush1.msra.mxu0 %v1567
    %1569 = vmatprep.subr.mxu0 0.0
    %v1570 = vand.u32 %v103, 4294901760
    %v1571 = vsub.f32 %v103, %v1570
    %v1572 = vand.u32 %v1571, 4294901760
    %v1573 = vsub.f32 %v1571, %v1572
    %v1574 = vand.u32 %v1573, 4294901760
    %1575 = vmatpush1.msra.mxu0 %v1574
    %1576 = vmatprep.subr.mxu0 0.0
    %v1577 = vand.u32 %v104, 4294901760
    %v1578 = vsub.f32 %v104, %v1577
    %v1579 = vand.u32 %v1578, 4294901760
    %v1580 = vsub.f32 %v1578, %v1579
    %v1581 = vand.u32 %v1580, 4294901760
    %1582 = vmatpush1.msra.mxu0 %v1581
    %1583 = vmatprep.subr.mxu0 0.0
    %v1584 = vand.u32 %v105, 4294901760
    %v1585 = vsub.f32 %v105, %v1584
    %v1586 = vand.u32 %v1585, 4294901760
    %v1587 = vsub.f32 %v1585, %v1586
    %v1588 = vand.u32 %v1587, 4294901760
    %1589 = vmatpush1.msra.mxu0 %v1588
    %1590 = vmatprep.subr.mxu0 0.0
    %v1591 = vand.u32 %v106, 4294901760
    %v1592 = vsub.f32 %v106, %v1591
    %v1593 = vand.u32 %v1592, 4294901760
    %v1594 = vsub.f32 %v1592, %v1593
    %v1595 = vand.u32 %v1594, 4294901760
    %1596 = vmatpush1.msra.mxu0 %v1595
    %1597 = vmatprep.subr.mxu0 0.0
    %1598 = vmatpush1.msra.mxu0 0.0
    %1599 = vmatprep.subr.mxu0 0.0
    %1600 = vmatpush1.msra.mxu0 0.0
    %1601 = vmatprep.subr.mxu0 0.0
    %1602 = vmatpush1.msra.mxu0 0.0
    %1603 = vmatprep.subr.mxu0 0.0
    %1604 = vmatpush1.msra.mxu0 0.0
    %1605 = vmatprep.subr.mxu0 0.0
    %1606 = vmatpush1.msra.mxu0 0.0
    %1607 = vmatprep.subr.mxu0 0.0
    %1608 = vmatpush1.msra.mxu0 0.0
    %1609 = vmatprep.subr.mxu0 0.0
    %1610 = vmatpush1.msra.mxu0 0.0
    %1611 = vmatprep.subr.mxu0 0.0
    %1612 = vmatpush1.msra.mxu0 0.0
    %1613 = vmatprep.subr.mxu0 0.0
    %1614 = vmatpush1.msra.mxu0 0.0
    %1615 = vmatprep.subr.mxu0 0.0
    %1616 = vmatpush1.msra.mxu0 0.0
    %1617 = vmatprep.subr.mxu0 0.0
    %1618 = vmatpush1.msra.mxu0 0.0
    %1619 = vmatprep.subr.mxu0 0.0
    %1620 = vmatpush1.msra.mxu0 0.0
    %1621 = vmatprep.subr.mxu0 0.0
    %1622 = vmatpush1.msra.mxu0 0.0
    %1623 = vmatprep.subr.mxu0 0.0
    %1624 = vmatpush1.msra.mxu0 0.0
    %1625 = vmatprep.subr.mxu0 0.0
    %1626 = vmatpush1.msra.mxu0 0.0
    %1627 = vmatprep.subr.mxu0 0.0
    %1628 = vmatpush1.msra.mxu0 0.0
    %1629 = vmatprep.mubr.f32.mxu0 0.0
    %v1630 = vand.u32 %v1393, 4294901760
    %1631 = vmatmul.mubr.f32.gmra.mrb[0].mxu0 %v1630
    %v1632 = vpop.f32.mrb[0].mxu0
    %v1633 = vadd.f32 %v1482, %v1632
    %v1634 = vpop.f32.mrb[0].mxu0
    %1635 = vdwg.mxu0
    %1636 = vmatprep.subr.mxu0 0.0
    %v1637 = vand.u32 %v91, 4294901760
    %v1638 = vsub.f32 %v91, %v1637
    %1639 = vmatpush1.msra.mxu0 %v1638
    %1640 = vmatprep.subr.mxu0 0.0
    %v1641 = vand.u32 %v92, 4294901760
    %v1642 = vsub.f32 %v92, %v1641
    %1643 = vmatpush1.msra.mxu0 %v1642
    %1644 = vmatprep.subr.mxu0 0.0
    %v1645 = vand.u32 %v93, 4294901760
    %v1646 = vsub.f32 %v93, %v1645
    %1647 = vmatpush1.msra.mxu0 %v1646
    %1648 = vmatprep.subr.mxu0 0.0
    %v1649 = vand.u32 %v94, 4294901760
    %v1650 = vsub.f32 %v94, %v1649
    %1651 = vmatpush1.msra.mxu0 %v1650
    %1652 = vmatprep.subr.mxu0 0.0
    %v1653 = vand.u32 %v95, 4294901760
    %v1654 = vsub.f32 %v95, %v1653
    %1655 = vmatpush1.msra.mxu0 %v1654
    %1656 = vmatprep.subr.mxu0 0.0
    %v1657 = vand.u32 %v96, 4294901760
    %v1658 = vsub.f32 %v96, %v1657
    %1659 = vmatpush1.msra.mxu0 %v1658
    %1660 = vmatprep.subr.mxu0 0.0
    %v1661 = vand.u32 %v97, 4294901760
    %v1662 = vsub.f32 %v97, %v1661
    %1663 = vmatpush1.msra.mxu0 %v1662
    %1664 = vmatprep.subr.mxu0 0.0
    %v1665 = vand.u32 %v98, 4294901760
    %v1666 = vsub.f32 %v98, %v1665
    %1667 = vmatpush1.msra.mxu0 %v1666
    %1668 = vmatprep.subr.mxu0 0.0
    %v1669 = vand.u32 %v99, 4294901760
    %v1670 = vsub.f32 %v99, %v1669
    %1671 = vmatpush1.msra.mxu0 %v1670
    %1672 = vmatprep.subr.mxu0 0.0
    %v1673 = vand.u32 %v100, 4294901760
    %v1674 = vsub.f32 %v100, %v1673
    %1675 = vmatpush1.msra.mxu0 %v1674
    %1676 = vmatprep.subr.mxu0 0.0
    %v1677 = vand.u32 %v101, 4294901760
    %v1678 = vsub.f32 %v101, %v1677
    %1679 = vmatpush1.msra.mxu0 %v1678
    %1680 = vmatprep.subr.mxu0 0.0
    %v1681 = vand.u32 %v102, 4294901760
    %v1682 = vsub.f32 %v102, %v1681
    %1683 = vmatpush1.msra.mxu0 %v1682
    %1684 = vmatprep.subr.mxu0 0.0
    %v1685 = vand.u32 %v103, 4294901760
    %v1686 = vsub.f32 %v103, %v1685
    %1687 = vmatpush1.msra.mxu0 %v1686
    %1688 = vmatprep.subr.mxu0 0.0
    %v1689 = vand.u32 %v104, 4294901760
    %v1690 = vsub.f32 %v104, %v1689
    %1691 = vmatpush1.msra.mxu0 %v1690
    %1692 = vmatprep.subr.mxu0 0.0
    %v1693 = vand.u32 %v105, 4294901760
    %v1694 = vsub.f32 %v105, %v1693
    %1695 = vmatpush1.msra.mxu0 %v1694
    %1696 = vmatprep.subr.mxu0 0.0
    %v1697 = vand.u32 %v106, 4294901760
    %v1698 = vsub.f32 %v106, %v1697
    %1699 = vmatpush1.msra.mxu0 %v1698
    %1700 = vmatprep.subr.mxu0 0.0
    %1701 = vmatpush1.msra.mxu0 0.0
    %1702 = vmatprep.subr.mxu0 0.0
    %1703 = vmatpush1.msra.mxu0 0.0
    %1704 = vmatprep.subr.mxu0 0.0
    %1705 = vmatpush1.msra.mxu0 0.0
    %1706 = vmatprep.subr.mxu0 0.0
    %1707 = vmatpush1.msra.mxu0 0.0
    %1708 = vmatprep.subr.mxu0 0.0
    %1709 = vmatpush1.msra.mxu0 0.0
    %1710 = vmatprep.subr.mxu0 0.0
    %1711 = vmatpush1.msra.mxu0 0.0
    %1712 = vmatprep.subr.mxu0 0.0
    %1713 = vmatpush1.msra.mxu0 0.0
    %1714 = vmatprep.subr.mxu0 0.0
    %1715 = vmatpush1.msra.mxu0 0.0
    %1716 = vmatprep.subr.mxu0 0.0
    %1717 = vmatpush1.msra.mxu0 0.0
    %1718 = vmatprep.subr.mxu0 0.0
    %1719 = vmatpush1.msra.mxu0 0.0
    %1720 = vmatprep.subr.mxu0 0.0
    %1721 = vmatpush1.msra.mxu0 0.0
    %1722 = vmatprep.subr.mxu0 0.0
    %1723 = vmatpush1.msra.mxu0 0.0
    %1724 = vmatprep.subr.mxu0 0.0
    %1725 = vmatpush1.msra.mxu0 0.0
    %1726 = vmatprep.subr.mxu0 0.0
    %1727 = vmatpush1.msra.mxu0 0.0
    %1728 = vmatprep.subr.mxu0 0.0
    %1729 = vmatpush1.msra.mxu0 0.0
    %1730 = vmatprep.subr.mxu0 0.0
    %1731 = vmatpush1.msra.mxu0 0.0
    %1732 = vmatprep.mubr.f32.mxu0 0.0
    %v1733 = vand.u32 %v1393, 4294901760
    %v1734 = vsub.f32 %v1393, %v1733
    %1735 = vmatmul.mubr.f32.gmra.mrb[0].mxu0 %v1734
    %v1736 = vpop.f32.mrb[0].mxu0
    %v1737 = vadd.f32 %v1633, %v1736
    %v1738 = vpop.f32.mrb[0].mxu0
    %1739 = vdwg.mxu0
    %1740 = vmatprep.subr.mxu0 0.0
    %v1741 = vand.u32 %v91, 4294901760
    %1742 = vmatpush1.msra.mxu0 %v1741
    %1743 = vmatprep.subr.mxu0 0.0
    %v1744 = vand.u32 %v92, 4294901760
    %1745 = vmatpush1.msra.mxu0 %v1744
    %1746 = vmatprep.subr.mxu0 0.0
    %v1747 = vand.u32 %v93, 4294901760
    %1748 = vmatpush1.msra.mxu0 %v1747
    %1749 = vmatprep.subr.mxu0 0.0
    %v1750 = vand.u32 %v94, 4294901760
    %1751 = vmatpush1.msra.mxu0 %v1750
    %1752 = vmatprep.subr.mxu0 0.0
    %v1753 = vand.u32 %v95, 4294901760
    %1754 = vmatpush1.msra.mxu0 %v1753
    %1755 = vmatprep.subr.mxu0 0.0
    %v1756 = vand.u32 %v96, 4294901760
    %1757 = vmatpush1.msra.mxu0 %v1756
    %1758 = vmatprep.subr.mxu0 0.0
    %v1759 = vand.u32 %v97, 4294901760
    %1760 = vmatpush1.msra.mxu0 %v1759
    %1761 = vmatprep.subr.mxu0 0.0
    %v1762 = vand.u32 %v98, 4294901760
    %1763 = vmatpush1.msra.mxu0 %v1762
    %1764 = vmatprep.subr.mxu0 0.0
    %v1765 = vand.u32 %v99, 4294901760
    %1766 = vmatpush1.msra.mxu0 %v1765
    %1767 = vmatprep.subr.mxu0 0.0
    %v1768 = vand.u32 %v100, 4294901760
    %1769 = vmatpush1.msra.mxu0 %v1768
    %1770 = vmatprep.subr.mxu0 0.0
    %v1771 = vand.u32 %v101, 4294901760
    %1772 = vmatpush1.msra.mxu0 %v1771
    %1773 = vmatprep.subr.mxu0 0.0
    %v1774 = vand.u32 %v102, 4294901760
    %1775 = vmatpush1.msra.mxu0 %v1774
    %1776 = vmatprep.subr.mxu0 0.0
    %v1777 = vand.u32 %v103, 4294901760
    %1778 = vmatpush1.msra.mxu0 %v1777
    %1779 = vmatprep.subr.mxu0 0.0
    %v1780 = vand.u32 %v104, 4294901760
    %1781 = vmatpush1.msra.mxu0 %v1780
    %1782 = vmatprep.subr.mxu0 0.0
    %v1783 = vand.u32 %v105, 4294901760
    %1784 = vmatpush1.msra.mxu0 %v1783
    %1785 = vmatprep.subr.mxu0 0.0
    %v1786 = vand.u32 %v106, 4294901760
    %1787 = vmatpush1.msra.mxu0 %v1786
    %1788 = vmatprep.subr.mxu0 0.0
    %1789 = vmatpush1.msra.mxu0 0.0
    %1790 = vmatprep.subr.mxu0 0.0
    %1791 = vmatpush1.msra.mxu0 0.0
    %1792 = vmatprep.subr.mxu0 0.0
    %1793 = vmatpush1.msra.mxu0 0.0
    %1794 = vmatprep.subr.mxu0 0.0
    %1795 = vmatpush1.msra.mxu0 0.0
    %1796 = vmatprep.subr.mxu0 0.0
    %1797 = vmatpush1.msra.mxu0 0.0
    %1798 = vmatprep.subr.mxu0 0.0
    %1799 = vmatpush1.msra.mxu0 0.0
    %1800 = vmatprep.subr.mxu0 0.0
    %1801 = vmatpush1.msra.mxu0 0.0
    %1802 = vmatprep.subr.mxu0 0.0
    %1803 = vmatpush1.msra.mxu0 0.0
    %1804 = vmatprep.subr.mxu0 0.0
    %1805 = vmatpush1.msra.mxu0 0.0
    %1806 = vmatprep.subr.mxu0 0.0
    %1807 = vmatpush1.msra.mxu0 0.0
    %1808 = vmatprep.subr.mxu0 0.0
    %1809 = vmatpush1.msra.mxu0 0.0
    %1810 = vmatprep.subr.mxu0 0.0
    %1811 = vmatpush1.msra.mxu0 0.0
    %1812 = vmatprep.subr.mxu0 0.0
    %1813 = vmatpush1.msra.mxu0 0.0
    %1814 = vmatprep.subr.mxu0 0.0
    %1815 = vmatpush1.msra.mxu0 0.0
    %1816 = vmatprep.subr.mxu0 0.0
    %1817 = vmatpush1.msra.mxu0 0.0
    %1818 = vmatprep.subr.mxu0 0.0
    %1819 = vmatpush1.msra.mxu0 0.0
    %1820 = vmatprep.mubr.f32.mxu0 0.0
    %v1821 = vand.u32 %v1393, 4294901760
    %v1822 = vsub.f32 %v1393, %v1821
    %v1823 = vand.u32 %v1822, 4294901760
    %1824 = vmatmul.mubr.f32.gmra.mrb[0].mxu0 %v1823
    %v1825 = vpop.f32.mrb[0].mxu0
    %v1826 = vadd.f32 %v1737, %v1825
    %v1827 = vpop.f32.mrb[0].mxu0
    %1828 = vdwg.mxu0
    %1829 = vmatprep.subr.mxu0 0.0
    %v1830 = vand.u32 %v91, 4294901760
    %v1831 = vsub.f32 %v91, %v1830
    %v1832 = vand.u32 %v1831, 4294901760
    %1833 = vmatpush1.msra.mxu0 %v1832
    %1834 = vmatprep.subr.mxu0 0.0
    %v1835 = vand.u32 %v92, 4294901760
    %v1836 = vsub.f32 %v92, %v1835
    %v1837 = vand.u32 %v1836, 4294901760
    %1838 = vmatpush1.msra.mxu0 %v1837
    %1839 = vmatprep.subr.mxu0 0.0
    %v1840 = vand.u32 %v93, 4294901760
    %v1841 = vsub.f32 %v93, %v1840
    %v1842 = vand.u32 %v1841, 4294901760
    %1843 = vmatpush1.msra.mxu0 %v1842
    %1844 = vmatprep.subr.mxu0 0.0
    %v1845 = vand.u32 %v94, 4294901760
    %v1846 = vsub.f32 %v94, %v1845
    %v1847 = vand.u32 %v1846, 4294901760
    %1848 = vmatpush1.msra.mxu0 %v1847
    %1849 = vmatprep.subr.mxu0 0.0
    %v1850 = vand.u32 %v95, 4294901760
    %v1851 = vsub.f32 %v95, %v1850
    %v1852 = vand.u32 %v1851, 4294901760
    %1853 = vmatpush1.msra.mxu0 %v1852
    %1854 = vmatprep.subr.mxu0 0.0
    %v1855 = vand.u32 %v96, 4294901760
    %v1856 = vsub.f32 %v96, %v1855
    %v1857 = vand.u32 %v1856, 4294901760
    %1858 = vmatpush1.msra.mxu0 %v1857
    %1859 = vmatprep.subr.mxu0 0.0
    %v1860 = vand.u32 %v97, 4294901760
    %v1861 = vsub.f32 %v97, %v1860
    %v1862 = vand.u32 %v1861, 4294901760
    %1863 = vmatpush1.msra.mxu0 %v1862
    %1864 = vmatprep.subr.mxu0 0.0
    %v1865 = vand.u32 %v98, 4294901760
    %v1866 = vsub.f32 %v98, %v1865
    %v1867 = vand.u32 %v1866, 4294901760
    %1868 = vmatpush1.msra.mxu0 %v1867
    %1869 = vmatprep.subr.mxu0 0.0
    %v1870 = vand.u32 %v99, 4294901760
    %v1871 = vsub.f32 %v99, %v1870
    %v1872 = vand.u32 %v1871, 4294901760
    %1873 = vmatpush1.msra.mxu0 %v1872
    %1874 = vmatprep.subr.mxu0 0.0
    %v1875 = vand.u32 %v100, 4294901760
    %v1876 = vsub.f32 %v100, %v1875
    %v1877 = vand.u32 %v1876, 4294901760
    %1878 = vmatpush1.msra.mxu0 %v1877
    %1879 = vmatprep.subr.mxu0 0.0
    %v1880 = vand.u32 %v101, 4294901760
    %v1881 = vsub.f32 %v101, %v1880
    %v1882 = vand.u32 %v1881, 4294901760
    %1883 = vmatpush1.msra.mxu0 %v1882
    %1884 = vmatprep.subr.mxu0 0.0
    %v1885 = vand.u32 %v102, 4294901760
    %v1886 = vsub.f32 %v102, %v1885
    %v1887 = vand.u32 %v1886, 4294901760
    %1888 = vmatpush1.msra.mxu0 %v1887
    %1889 = vmatprep.subr.mxu0 0.0
    %v1890 = vand.u32 %v103, 4294901760
    %v1891 = vsub.f32 %v103, %v1890
    %v1892 = vand.u32 %v1891, 4294901760
    %1893 = vmatpush1.msra.mxu0 %v1892
    %1894 = vmatprep.subr.mxu0 0.0
    %v1895 = vand.u32 %v104, 4294901760
    %v1896 = vsub.f32 %v104, %v1895
    %v1897 = vand.u32 %v1896, 4294901760
    %1898 = vmatpush1.msra.mxu0 %v1897
    %1899 = vmatprep.subr.mxu0 0.0
    %v1900 = vand.u32 %v105, 4294901760
    %v1901 = vsub.f32 %v105, %v1900
    %v1902 = vand.u32 %v1901, 4294901760
    %1903 = vmatpush1.msra.mxu0 %v1902
    %1904 = vmatprep.subr.mxu0 0.0
    %v1905 = vand.u32 %v106, 4294901760
    %v1906 = vsub.f32 %v106, %v1905
    %v1907 = vand.u32 %v1906, 4294901760
    %1908 = vmatpush1.msra.mxu0 %v1907
    %1909 = vmatprep.subr.mxu0 0.0
    %1910 = vmatpush1.msra.mxu0 0.0
    %1911 = vmatprep.subr.mxu0 0.0
    %1912 = vmatpush1.msra.mxu0 0.0
    %1913 = vmatprep.subr.mxu0 0.0
    %1914 = vmatpush1.msra.mxu0 0.0
    %1915 = vmatprep.subr.mxu0 0.0
    %1916 = vmatpush1.msra.mxu0 0.0
    %1917 = vmatprep.subr.mxu0 0.0
    %1918 = vmatpush1.msra.mxu0 0.0
    %1919 = vmatprep.subr.mxu0 0.0
    %1920 = vmatpush1.msra.mxu0 0.0
    %1921 = vmatprep.subr.mxu0 0.0
    %1922 = vmatpush1.msra.mxu0 0.0
    %1923 = vmatprep.subr.mxu0 0.0
    %1924 = vmatpush1.msra.mxu0 0.0
    %1925 = vmatprep.subr.mxu0 0.0
    %1926 = vmatpush1.msra.mxu0 0.0
    %1927 = vmatprep.subr.mxu0 0.0
    %1928 = vmatpush1.msra.mxu0 0.0
    %1929 = vmatprep.subr.mxu0 0.0
    %1930 = vmatpush1.msra.mxu0 0.0
    %1931 = vmatprep.subr.mxu0 0.0
    %1932 = vmatpush1.msra.mxu0 0.0
    %1933 = vmatprep.subr.mxu0 0.0
    %1934 = vmatpush1.msra.mxu0 0.0
    %1935 = vmatprep.subr.mxu0 0.0
    %1936 = vmatpush1.msra.mxu0 0.0
    %1937 = vmatprep.subr.mxu0 0.0
    %1938 = vmatpush1.msra.mxu0 0.0
    %1939 = vmatprep.subr.mxu0 0.0
    %1940 = vmatpush1.msra.mxu0 0.0
    %1941 = vmatprep.mubr.f32.mxu0 0.0
    %v1942 = vand.u32 %v1393, 4294901760
    %1943 = vmatmul.mubr.f32.gmra.mrb[0].mxu0 %v1942
    %v1944 = vpop.f32.mrb[0].mxu0
    %v1945 = vadd.f32 %v1826, %v1944
    %v1946 = vpop.f32.mrb[0].mxu0
    %1947 = vdwg.mxu0
    %1948 = vmatprep.subr.mxu0 0.0
    %v1949 = vand.u32 %v91, 4294901760
    %1950 = vmatpush1.msra.mxu0 %v1949
    %1951 = vmatprep.subr.mxu0 0.0
    %v1952 = vand.u32 %v92, 4294901760
    %1953 = vmatpush1.msra.mxu0 %v1952
    %1954 = vmatprep.subr.mxu0 0.0
    %v1955 = vand.u32 %v93, 4294901760
    %1956 = vmatpush1.msra.mxu0 %v1955
    %1957 = vmatprep.subr.mxu0 0.0
    %v1958 = vand.u32 %v94, 4294901760
    %1959 = vmatpush1.msra.mxu0 %v1958
    %1960 = vmatprep.subr.mxu0 0.0
    %v1961 = vand.u32 %v95, 4294901760
    %1962 = vmatpush1.msra.mxu0 %v1961
    %1963 = vmatprep.subr.mxu0 0.0
    %v1964 = vand.u32 %v96, 4294901760
    %1965 = vmatpush1.msra.mxu0 %v1964
    %1966 = vmatprep.subr.mxu0 0.0
    %v1967 = vand.u32 %v97, 4294901760
    %1968 = vmatpush1.msra.mxu0 %v1967
    %1969 = vmatprep.subr.mxu0 0.0
    %v1970 = vand.u32 %v98, 4294901760
    %1971 = vmatpush1.msra.mxu0 %v1970
    %1972 = vmatprep.subr.mxu0 0.0
    %v1973 = vand.u32 %v99, 4294901760
    %1974 = vmatpush1.msra.mxu0 %v1973
    %1975 = vmatprep.subr.mxu0 0.0
    %v1976 = vand.u32 %v100, 4294901760
    %1977 = vmatpush1.msra.mxu0 %v1976
    %1978 = vmatprep.subr.mxu0 0.0
    %v1979 = vand.u32 %v101, 4294901760
    %1980 = vmatpush1.msra.mxu0 %v1979
    %1981 = vmatprep.subr.mxu0 0.0
    %v1982 = vand.u32 %v102, 4294901760
    %1983 = vmatpush1.msra.mxu0 %v1982
    %1984 = vmatprep.subr.mxu0 0.0
    %v1985 = vand.u32 %v103, 4294901760
    %1986 = vmatpush1.msra.mxu0 %v1985
    %1987 = vmatprep.subr.mxu0 0.0
    %v1988 = vand.u32 %v104, 4294901760
    %1989 = vmatpush1.msra.mxu0 %v1988
    %1990 = vmatprep.subr.mxu0 0.0
    %v1991 = vand.u32 %v105, 4294901760
    %1992 = vmatpush1.msra.mxu0 %v1991
    %1993 = vmatprep.subr.mxu0 0.0
    %v1994 = vand.u32 %v106, 4294901760
    %1995 = vmatpush1.msra.mxu0 %v1994
    %1996 = vmatprep.subr.mxu0 0.0
    %1997 = vmatpush1.msra.mxu0 0.0
    %1998 = vmatprep.subr.mxu0 0.0
    %1999 = vmatpush1.msra.mxu0 0.0
    %2000 = vmatprep.subr.mxu0 0.0
    %2001 = vmatpush1.msra.mxu0 0.0
    %2002 = vmatprep.subr.mxu0 0.0
    %2003 = vmatpush1.msra.mxu0 0.0
    %2004 = vmatprep.subr.mxu0 0.0
    %2005 = vmatpush1.msra.mxu0 0.0
    %2006 = vmatprep.subr.mxu0 0.0
    %2007 = vmatpush1.msra.mxu0 0.0
    %2008 = vmatprep.subr.mxu0 0.0
    %2009 = vmatpush1.msra.mxu0 0.0
    %2010 = vmatprep.subr.mxu0 0.0
    %2011 = vmatpush1.msra.mxu0 0.0
    %2012 = vmatprep.subr.mxu0 0.0
    %2013 = vmatpush1.msra.mxu0 0.0
    %2014 = vmatprep.subr.mxu0 0.0
    %2015 = vmatpush1.msra.mxu0 0.0
    %2016 = vmatprep.subr.mxu0 0.0
    %2017 = vmatpush1.msra.mxu0 0.0
    %2018 = vmatprep.subr.mxu0 0.0
    %2019 = vmatpush1.msra.mxu0 0.0
    %2020 = vmatprep.subr.mxu0 0.0
    %2021 = vmatpush1.msra.mxu0 0.0
    %2022 = vmatprep.subr.mxu0 0.0
    %2023 = vmatpush1.msra.mxu0 0.0
    %2024 = vmatprep.subr.mxu0 0.0
    %2025 = vmatpush1.msra.mxu0 0.0
    %2026 = vmatprep.subr.mxu0 0.0
    %2027 = vmatpush1.msra.mxu0 0.0
    %2028 = vmatprep.mubr.f32.mxu0 0.0
    %v2029 = vand.u32 %v1393, 4294901760
    %2030 = vmatmul.mubr.f32.gmra.mrb[0].mxu0 %v2029
    %v2031 = vpop.f32.mrb[0].mxu0
    %v2032 = vadd.f32 %v1945, %v2031
    %v2033 = vpop.f32.mrb[0].mxu0
    %2034 = vdwg.mxu0
    %2035 = vmatprep.subr.mxu0 0.0
    %v2036 = vand.u32 %v75, 4294901760
    %2037 = vmatpush1.msra.mxu0 %v2036
    %2038 = vmatprep.subr.mxu0 0.0
    %v2039 = vand.u32 %v76, 4294901760
    %2040 = vmatpush1.msra.mxu0 %v2039
    %2041 = vmatprep.subr.mxu0 0.0
    %v2042 = vand.u32 %v77, 4294901760
    %2043 = vmatpush1.msra.mxu0 %v2042
    %2044 = vmatprep.subr.mxu0 0.0
    %v2045 = vand.u32 %v78, 4294901760
    %2046 = vmatpush1.msra.mxu0 %v2045
    %2047 = vmatprep.subr.mxu0 0.0
    %v2048 = vand.u32 %v79, 4294901760
    %2049 = vmatpush1.msra.mxu0 %v2048
    %2050 = vmatprep.subr.mxu0 0.0
    %v2051 = vand.u32 %v80, 4294901760
    %2052 = vmatpush1.msra.mxu0 %v2051
    %2053 = vmatprep.subr.mxu0 0.0
    %v2054 = vand.u32 %v81, 4294901760
    %2055 = vmatpush1.msra.mxu0 %v2054
    %2056 = vmatprep.subr.mxu0 0.0
    %v2057 = vand.u32 %v82, 4294901760
    %2058 = vmatpush1.msra.mxu0 %v2057
    %2059 = vmatprep.subr.mxu0 0.0
    %v2060 = vand.u32 %v83, 4294901760
    %2061 = vmatpush1.msra.mxu0 %v2060
    %2062 = vmatprep.subr.mxu0 0.0
    %v2063 = vand.u32 %v84, 4294901760
    %2064 = vmatpush1.msra.mxu0 %v2063
    %2065 = vmatprep.subr.mxu0 0.0
    %v2066 = vand.u32 %v85, 4294901760
    %2067 = vmatpush1.msra.mxu0 %v2066
    %2068 = vmatprep.subr.mxu0 0.0
    %v2069 = vand.u32 %v86, 4294901760
    %2070 = vmatpush1.msra.mxu0 %v2069
    %2071 = vmatprep.subr.mxu0 0.0
    %v2072 = vand.u32 %v87, 4294901760
    %2073 = vmatpush1.msra.mxu0 %v2072
    %2074 = vmatprep.subr.mxu0 0.0
    %v2075 = vand.u32 %v88, 4294901760
    %2076 = vmatpush1.msra.mxu0 %v2075
    %2077 = vmatprep.subr.mxu0 0.0
    %v2078 = vand.u32 %v89, 4294901760
    %2079 = vmatpush1.msra.mxu0 %v2078
    %2080 = vmatprep.subr.mxu0 0.0
    %v2081 = vand.u32 %v90, 4294901760
    %2082 = vmatpush1.msra.mxu0 %v2081
    %2083 = vmatprep.subr.mxu0 0.0
    %2084 = vmatpush1.msra.mxu0 0.0
    %2085 = vmatprep.subr.mxu0 0.0
    %2086 = vmatpush1.msra.mxu0 0.0
    %2087 = vmatprep.subr.mxu0 0.0
    %2088 = vmatpush1.msra.mxu0 0.0
    %2089 = vmatprep.subr.mxu0 0.0
    %2090 = vmatpush1.msra.mxu0 0.0
    %2091 = vmatprep.subr.mxu0 0.0
    %2092 = vmatpush1.msra.mxu0 0.0
    %2093 = vmatprep.subr.mxu0 0.0
    %2094 = vmatpush1.msra.mxu0 0.0
    %2095 = vmatprep.subr.mxu0 0.0
    %2096 = vmatpush1.msra.mxu0 0.0
    %2097 = vmatprep.subr.mxu0 0.0
    %2098 = vmatpush1.msra.mxu0 0.0
    %2099 = vmatprep.subr.mxu0 0.0
    %2100 = vmatpush1.msra.mxu0 0.0
    %2101 = vmatprep.subr.mxu0 0.0
    %2102 = vmatpush1.msra.mxu0 0.0
    %2103 = vmatprep.subr.mxu0 0.0
    %2104 = vmatpush1.msra.mxu0 0.0
    %2105 = vmatprep.subr.mxu0 0.0
    %2106 = vmatpush1.msra.mxu0 0.0
    %2107 = vmatprep.subr.mxu0 0.0
    %2108 = vmatpush1.msra.mxu0 0.0
    %2109 = vmatprep.subr.mxu0 0.0
    %2110 = vmatpush1.msra.mxu0 0.0
    %2111 = vmatprep.subr.mxu0 0.0
    %2112 = vmatpush1.msra.mxu0 0.0
    %2113 = vmatprep.subr.mxu0 0.0
    %2114 = vmatpush1.msra.mxu0 0.0
    %2115 = vmatprep.mubr.f32.mxu0 0.0
    %v2116 = vand.u32 %v1392, 4294901760
    %v2117 = vsub.f32 %v1392, %v2116
    %v2118 = vand.u32 %v2117, 4294901760
    %v2119 = vsub.f32 %v2117, %v2118
    %v2120 = vand.u32 %v2119, 4294901760
    %2121 = vmatmul.mubr.f32.gmra.mrb[0].mxu0 %v2120
    %v2122 = vpop.f32.mrb[0].mxu0
    %v2123 = vadd.f32 %v2032, %v2122
    %v2124 = vpop.f32.mrb[0].mxu0
    %2125 = vdwg.mxu0
    %2126 = vmatprep.subr.mxu0 0.0
    %v2127 = vand.u32 %v75, 4294901760
    %v2128 = vsub.f32 %v75, %v2127
    %v2129 = vand.u32 %v2128, 4294901760
    %v2130 = vsub.f32 %v2128, %v2129
    %v2131 = vand.u32 %v2130, 4294901760
    %2132 = vmatpush1.msra.mxu0 %v2131
    %2133 = vmatprep.subr.mxu0 0.0
    %v2134 = vand.u32 %v76, 4294901760
    %v2135 = vsub.f32 %v76, %v2134
    %v2136 = vand.u32 %v2135, 4294901760
    %v2137 = vsub.f32 %v2135, %v2136
    %v2138 = vand.u32 %v2137, 4294901760
    %2139 = vmatpush1.msra.mxu0 %v2138
    %2140 = vmatprep.subr.mxu0 0.0
    %v2141 = vand.u32 %v77, 4294901760
    %v2142 = vsub.f32 %v77, %v2141
    %v2143 = vand.u32 %v2142, 4294901760
    %v2144 = vsub.f32 %v2142, %v2143
    %v2145 = vand.u32 %v2144, 4294901760
    %2146 = vmatpush1.msra.mxu0 %v2145
    %2147 = vmatprep.subr.mxu0 0.0
    %v2148 = vand.u32 %v78, 4294901760
    %v2149 = vsub.f32 %v78, %v2148
    %v2150 = vand.u32 %v2149, 4294901760
    %v2151 = vsub.f32 %v2149, %v2150
    %v2152 = vand.u32 %v2151, 4294901760
    %2153 = vmatpush1.msra.mxu0 %v2152
    %2154 = vmatprep.subr.mxu0 0.0
    %v2155 = vand.u32 %v79, 4294901760
    %v2156 = vsub.f32 %v79, %v2155
    %v2157 = vand.u32 %v2156, 4294901760
    %v2158 = vsub.f32 %v2156, %v2157
    %v2159 = vand.u32 %v2158, 4294901760
    %2160 = vmatpush1.msra.mxu0 %v2159
    %2161 = vmatprep.subr.mxu0 0.0
    %v2162 = vand.u32 %v80, 4294901760
    %v2163 = vsub.f32 %v80, %v2162
    %v2164 = vand.u32 %v2163, 4294901760
    %v2165 = vsub.f32 %v2163, %v2164
    %v2166 = vand.u32 %v2165, 4294901760
    %2167 = vmatpush1.msra.mxu0 %v2166
    %2168 = vmatprep.subr.mxu0 0.0
    %v2169 = vand.u32 %v81, 4294901760
    %v2170 = vsub.f32 %v81, %v2169
    %v2171 = vand.u32 %v2170, 4294901760
    %v2172 = vsub.f32 %v2170, %v2171
    %v2173 = vand.u32 %v2172, 4294901760
    %2174 = vmatpush1.msra.mxu0 %v2173
    %2175 = vmatprep.subr.mxu0 0.0
    %v2176 = vand.u32 %v82, 4294901760
    %v2177 = vsub.f32 %v82, %v2176
    %v2178 = vand.u32 %v2177, 4294901760
    %v2179 = vsub.f32 %v2177, %v2178
    %v2180 = vand.u32 %v2179, 4294901760
    %2181 = vmatpush1.msra.mxu0 %v2180
    %2182 = vmatprep.subr.mxu0 0.0
    %v2183 = vand.u32 %v83, 4294901760
    %v2184 = vsub.f32 %v83, %v2183
    %v2185 = vand.u32 %v2184, 4294901760
    %v2186 = vsub.f32 %v2184, %v2185
    %v2187 = vand.u32 %v2186, 4294901760
    %2188 = vmatpush1.msra.mxu0 %v2187
    %2189 = vmatprep.subr.mxu0 0.0
    %v2190 = vand.u32 %v84, 4294901760
    %v2191 = vsub.f32 %v84, %v2190
    %v2192 = vand.u32 %v2191, 4294901760
    %v2193 = vsub.f32 %v2191, %v2192
    %v2194 = vand.u32 %v2193, 4294901760
    %2195 = vmatpush1.msra.mxu0 %v2194
    %2196 = vmatprep.subr.mxu0 0.0
    %v2197 = vand.u32 %v85, 4294901760
    %v2198 = vsub.f32 %v85, %v2197
    %v2199 = vand.u32 %v2198, 4294901760
    %v2200 = vsub.f32 %v2198, %v2199
    %v2201 = vand.u32 %v2200, 4294901760
    %2202 = vmatpush1.msra.mxu0 %v2201
    %2203 = vmatprep.subr.mxu0 0.0
    %v2204 = vand.u32 %v86, 4294901760
    %v2205 = vsub.f32 %v86, %v2204
    %v2206 = vand.u32 %v2205, 4294901760
    %v2207 = vsub.f32 %v2205, %v2206
    %v2208 = vand.u32 %v2207, 4294901760
    %2209 = vmatpush1.msra.mxu0 %v2208
    %2210 = vmatprep.subr.mxu0 0.0
    %v2211 = vand.u32 %v87, 4294901760
    %v2212 = vsub.f32 %v87, %v2211
    %v2213 = vand.u32 %v2212, 4294901760
    %v2214 = vsub.f32 %v2212, %v2213
    %v2215 = vand.u32 %v2214, 4294901760
    %2216 = vmatpush1.msra.mxu0 %v2215
    %2217 = vmatprep.subr.mxu0 0.0
    %v2218 = vand.u32 %v88, 4294901760
    %v2219 = vsub.f32 %v88, %v2218
    %v2220 = vand.u32 %v2219, 4294901760
    %v2221 = vsub.f32 %v2219, %v2220
    %v2222 = vand.u32 %v2221, 4294901760
    %2223 = vmatpush1.msra.mxu0 %v2222
    %2224 = vmatprep.subr.mxu0 0.0
    %v2225 = vand.u32 %v89, 4294901760
    %v2226 = vsub.f32 %v89, %v2225
    %v2227 = vand.u32 %v2226, 4294901760
    %v2228 = vsub.f32 %v2226, %v2227
    %v2229 = vand.u32 %v2228, 4294901760
    %2230 = vmatpush1.msra.mxu0 %v2229
    %2231 = vmatprep.subr.mxu0 0.0
    %v2232 = vand.u32 %v90, 4294901760
    %v2233 = vsub.f32 %v90, %v2232
    %v2234 = vand.u32 %v2233, 4294901760
    %v2235 = vsub.f32 %v2233, %v2234
    %v2236 = vand.u32 %v2235, 4294901760
    %2237 = vmatpush1.msra.mxu0 %v2236
    %2238 = vmatprep.subr.mxu0 0.0
    %2239 = vmatpush1.msra.mxu0 0.0
    %2240 = vmatprep.subr.mxu0 0.0
    %2241 = vmatpush1.msra.mxu0 0.0
    %2242 = vmatprep.subr.mxu0 0.0
    %2243 = vmatpush1.msra.mxu0 0.0
    %2244 = vmatprep.subr.mxu0 0.0
    %2245 = vmatpush1.msra.mxu0 0.0
    %2246 = vmatprep.subr.mxu0 0.0
    %2247 = vmatpush1.msra.mxu0 0.0
    %2248 = vmatprep.subr.mxu0 0.0
    %2249 = vmatpush1.msra.mxu0 0.0
    %2250 = vmatprep.subr.mxu0 0.0
    %2251 = vmatpush1.msra.mxu0 0.0
    %2252 = vmatprep.subr.mxu0 0.0
    %2253 = vmatpush1.msra.mxu0 0.0
    %2254 = vmatprep.subr.mxu0 0.0
    %2255 = vmatpush1.msra.mxu0 0.0
    %2256 = vmatprep.subr.mxu0 0.0
    %2257 = vmatpush1.msra.mxu0 0.0
    %2258 = vmatprep.subr.mxu0 0.0
    %2259 = vmatpush1.msra.mxu0 0.0
    %2260 = vmatprep.subr.mxu0 0.0
    %2261 = vmatpush1.msra.mxu0 0.0
    %2262 = vmatprep.subr.mxu0 0.0
    %2263 = vmatpush1.msra.mxu0 0.0
    %2264 = vmatprep.subr.mxu0 0.0
    %2265 = vmatpush1.msra.mxu0 0.0
    %2266 = vmatprep.subr.mxu0 0.0
    %2267 = vmatpush1.msra.mxu0 0.0
    %2268 = vmatprep.subr.mxu0 0.0
    %2269 = vmatpush1.msra.mxu0 0.0
    %2270 = vmatprep.mubr.f32.mxu0 0.0
    %v2271 = vand.u32 %v1392, 4294901760
    %2272 = vmatmul.mubr.f32.gmra.mrb[0].mxu0 %v2271
    %v2273 = vpop.f32.mrb[0].mxu0
    %v2274 = vadd.f32 %v2123, %v2273
    %v2275 = vpop.f32.mrb[0].mxu0
    %2276 = vdwg.mxu0
    %2277 = vmatprep.subr.mxu0 0.0
    %v2278 = vand.u32 %v75, 4294901760
    %v2279 = vsub.f32 %v75, %v2278
    %2280 = vmatpush1.msra.mxu0 %v2279
    %2281 = vmatprep.subr.mxu0 0.0
    %v2282 = vand.u32 %v76, 4294901760
    %v2283 = vsub.f32 %v76, %v2282
    %2284 = vmatpush1.msra.mxu0 %v2283
    %2285 = vmatprep.subr.mxu0 0.0
    %v2286 = vand.u32 %v77, 4294901760
    %v2287 = vsub.f32 %v77, %v2286
    %2288 = vmatpush1.msra.mxu0 %v2287
    %2289 = vmatprep.subr.mxu0 0.0
    %v2290 = vand.u32 %v78, 4294901760
    %v2291 = vsub.f32 %v78, %v2290
    %2292 = vmatpush1.msra.mxu0 %v2291
    %2293 = vmatprep.subr.mxu0 0.0
    %v2294 = vand.u32 %v79, 4294901760
    %v2295 = vsub.f32 %v79, %v2294
    %2296 = vmatpush1.msra.mxu0 %v2295
    %2297 = vmatprep.subr.mxu0 0.0
    %v2298 = vand.u32 %v80, 4294901760
    %v2299 = vsub.f32 %v80, %v2298
    %2300 = vmatpush1.msra.mxu0 %v2299
    %2301 = vmatprep.subr.mxu0 0.0
    %v2302 = vand.u32 %v81, 4294901760
    %v2303 = vsub.f32 %v81, %v2302
    %2304 = vmatpush1.msra.mxu0 %v2303
    %2305 = vmatprep.subr.mxu0 0.0
    %v2306 = vand.u32 %v82, 4294901760
    %v2307 = vsub.f32 %v82, %v2306
    %2308 = vmatpush1.msra.mxu0 %v2307
    %2309 = vmatprep.subr.mxu0 0.0
    %v2310 = vand.u32 %v83, 4294901760
    %v2311 = vsub.f32 %v83, %v2310
    %2312 = vmatpush1.msra.mxu0 %v2311
    %2313 = vmatprep.subr.mxu0 0.0
    %v2314 = vand.u32 %v84, 4294901760
    %v2315 = vsub.f32 %v84, %v2314
    %2316 = vmatpush1.msra.mxu0 %v2315
    %2317 = vmatprep.subr.mxu0 0.0
    %v2318 = vand.u32 %v85, 4294901760
    %v2319 = vsub.f32 %v85, %v2318
    %2320 = vmatpush1.msra.mxu0 %v2319
    %2321 = vmatprep.subr.mxu0 0.0
    %v2322 = vand.u32 %v86, 4294901760
    %v2323 = vsub.f32 %v86, %v2322
    %2324 = vmatpush1.msra.mxu0 %v2323
    %2325 = vmatprep.subr.mxu0 0.0
    %v2326 = vand.u32 %v87, 4294901760
    %v2327 = vsub.f32 %v87, %v2326
    %2328 = vmatpush1.msra.mxu0 %v2327
    %2329 = vmatprep.subr.mxu0 0.0
    %v2330 = vand.u32 %v88, 4294901760
    %v2331 = vsub.f32 %v88, %v2330
    %2332 = vmatpush1.msra.mxu0 %v2331
    %2333 = vmatprep.subr.mxu0 0.0
    %v2334 = vand.u32 %v89, 4294901760
    %v2335 = vsub.f32 %v89, %v2334
    %2336 = vmatpush1.msra.mxu0 %v2335
    %2337 = vmatprep.subr.mxu0 0.0
    %v2338 = vand.u32 %v90, 4294901760
    %v2339 = vsub.f32 %v90, %v2338
    %2340 = vmatpush1.msra.mxu0 %v2339
    %2341 = vmatprep.subr.mxu0 0.0
    %2342 = vmatpush1.msra.mxu0 0.0
    %2343 = vmatprep.subr.mxu0 0.0
    %2344 = vmatpush1.msra.mxu0 0.0
    %2345 = vmatprep.subr.mxu0 0.0
    %2346 = vmatpush1.msra.mxu0 0.0
    %2347 = vmatprep.subr.mxu0 0.0
    %2348 = vmatpush1.msra.mxu0 0.0
    %2349 = vmatprep.subr.mxu0 0.0
    %2350 = vmatpush1.msra.mxu0 0.0
    %2351 = vmatprep.subr.mxu0 0.0
    %2352 = vmatpush1.msra.mxu0 0.0
    %2353 = vmatprep.subr.mxu0 0.0
    %2354 = vmatpush1.msra.mxu0 0.0
    %2355 = vmatprep.subr.mxu0 0.0
    %2356 = vmatpush1.msra.mxu0 0.0
    %2357 = vmatprep.subr.mxu0 0.0
    %2358 = vmatpush1.msra.mxu0 0.0
    %2359 = vmatprep.subr.mxu0 0.0
    %2360 = vmatpush1.msra.mxu0 0.0
    %2361 = vmatprep.subr.mxu0 0.0
    %2362 = vmatpush1.msra.mxu0 0.0
    %2363 = vmatprep.subr.mxu0 0.0
    %2364 = vmatpush1.msra.mxu0 0.0
    %2365 = vmatprep.subr.mxu0 0.0
    %2366 = vmatpush1.msra.mxu0 0.0
    %2367 = vmatprep.subr.mxu0 0.0
    %2368 = vmatpush1.msra.mxu0 0.0
    %2369 = vmatprep.subr.mxu0 0.0
    %2370 = vmatpush1.msra.mxu0 0.0
    %2371 = vmatprep.subr.mxu0 0.0
    %2372 = vmatpush1.msra.mxu0 0.0
    %2373 = vmatprep.mubr.f32.mxu0 0.0
    %v2374 = vand.u32 %v1392, 4294901760
    %v2375 = vsub.f32 %v1392, %v2374
    %2376 = vmatmul.mubr.f32.gmra.mrb[0].mxu0 %v2375
    %v2377 = vpop.f32.mrb[0].mxu0
    %v2378 = vadd.f32 %v2274, %v2377
    %v2379 = vpop.f32.mrb[0].mxu0
    %2380 = vdwg.mxu0
    %2381 = vmatprep.subr.mxu0 0.0
    %v2382 = vand.u32 %v75, 4294901760
    %2383 = vmatpush1.msra.mxu0 %v2382
    %2384 = vmatprep.subr.mxu0 0.0
    %v2385 = vand.u32 %v76, 4294901760
    %2386 = vmatpush1.msra.mxu0 %v2385
    %2387 = vmatprep.subr.mxu0 0.0
    %v2388 = vand.u32 %v77, 4294901760
    %2389 = vmatpush1.msra.mxu0 %v2388
    %2390 = vmatprep.subr.mxu0 0.0
    %v2391 = vand.u32 %v78, 4294901760
    %2392 = vmatpush1.msra.mxu0 %v2391
    %2393 = vmatprep.subr.mxu0 0.0
    %v2394 = vand.u32 %v79, 4294901760
    %2395 = vmatpush1.msra.mxu0 %v2394
    %2396 = vmatprep.subr.mxu0 0.0
    %v2397 = vand.u32 %v80, 4294901760
    %2398 = vmatpush1.msra.mxu0 %v2397
    %2399 = vmatprep.subr.mxu0 0.0
    %v2400 = vand.u32 %v81, 4294901760
    %2401 = vmatpush1.msra.mxu0 %v2400
    %2402 = vmatprep.subr.mxu0 0.0
    %v2403 = vand.u32 %v82, 4294901760
    %2404 = vmatpush1.msra.mxu0 %v2403
    %2405 = vmatprep.subr.mxu0 0.0
    %v2406 = vand.u32 %v83, 4294901760
    %2407 = vmatpush1.msra.mxu0 %v2406
    %2408 = vmatprep.subr.mxu0 0.0
    %v2409 = vand.u32 %v84, 4294901760
    %2410 = vmatpush1.msra.mxu0 %v2409
    %2411 = vmatprep.subr.mxu0 0.0
    %v2412 = vand.u32 %v85, 4294901760
    %2413 = vmatpush1.msra.mxu0 %v2412
    %2414 = vmatprep.subr.mxu0 0.0
    %v2415 = vand.u32 %v86, 4294901760
    %2416 = vmatpush1.msra.mxu0 %v2415
    %2417 = vmatprep.subr.mxu0 0.0
    %v2418 = vand.u32 %v87, 4294901760
    %2419 = vmatpush1.msra.mxu0 %v2418
    %2420 = vmatprep.subr.mxu0 0.0
    %v2421 = vand.u32 %v88, 4294901760
    %2422 = vmatpush1.msra.mxu0 %v2421
    %2423 = vmatprep.subr.mxu0 0.0
    %v2424 = vand.u32 %v89, 4294901760
    %2425 = vmatpush1.msra.mxu0 %v2424
    %2426 = vmatprep.subr.mxu0 0.0
    %v2427 = vand.u32 %v90, 4294901760
    %2428 = vmatpush1.msra.mxu0 %v2427
    %2429 = vmatprep.subr.mxu0 0.0
    %2430 = vmatpush1.msra.mxu0 0.0
    %2431 = vmatprep.subr.mxu0 0.0
    %2432 = vmatpush1.msra.mxu0 0.0
    %2433 = vmatprep.subr.mxu0 0.0
    %2434 = vmatpush1.msra.mxu0 0.0
    %2435 = vmatprep.subr.mxu0 0.0
    %2436 = vmatpush1.msra.mxu0 0.0
    %2437 = vmatprep.subr.mxu0 0.0
    %2438 = vmatpush1.msra.mxu0 0.0
    %2439 = vmatprep.subr.mxu0 0.0
    %2440 = vmatpush1.msra.mxu0 0.0
    %2441 = vmatprep.subr.mxu0 0.0
    %2442 = vmatpush1.msra.mxu0 0.0
    %2443 = vmatprep.subr.mxu0 0.0
    %2444 = vmatpush1.msra.mxu0 0.0
    %2445 = vmatprep.subr.mxu0 0.0
    %2446 = vmatpush1.msra.mxu0 0.0
    %2447 = vmatprep.subr.mxu0 0.0
    %2448 = vmatpush1.msra.mxu0 0.0
    %2449 = vmatprep.subr.mxu0 0.0
    %2450 = vmatpush1.msra.mxu0 0.0
    %2451 = vmatprep.subr.mxu0 0.0
    %2452 = vmatpush1.msra.mxu0 0.0
    %2453 = vmatprep.subr.mxu0 0.0
    %2454 = vmatpush1.msra.mxu0 0.0
    %2455 = vmatprep.subr.mxu0 0.0
    %2456 = vmatpush1.msra.mxu0 0.0
    %2457 = vmatprep.subr.mxu0 0.0
    %2458 = vmatpush1.msra.mxu0 0.0
    %2459 = vmatprep.subr.mxu0 0.0
    %2460 = vmatpush1.msra.mxu0 0.0
    %2461 = vmatprep.mubr.f32.mxu0 0.0
    %v2462 = vand.u32 %v1392, 4294901760
    %v2463 = vsub.f32 %v1392, %v2462
    %v2464 = vand.u32 %v2463, 4294901760
    %2465 = vmatmul.mubr.f32.gmra.mrb[0].mxu0 %v2464
    %v2466 = vpop.f32.mrb[0].mxu0
    %v2467 = vadd.f32 %v2378, %v2466
    %v2468 = vpop.f32.mrb[0].mxu0
    %2469 = vdwg.mxu0
    %2470 = vmatprep.subr.mxu0 0.0
    %v2471 = vand.u32 %v75, 4294901760
    %v2472 = vsub.f32 %v75, %v2471
    %v2473 = vand.u32 %v2472, 4294901760
    %2474 = vmatpush1.msra.mxu0 %v2473
    %2475 = vmatprep.subr.mxu0 0.0
    %v2476 = vand.u32 %v76, 4294901760
    %v2477 = vsub.f32 %v76, %v2476
    %v2478 = vand.u32 %v2477, 4294901760
    %2479 = vmatpush1.msra.mxu0 %v2478
    %2480 = vmatprep.subr.mxu0 0.0
    %v2481 = vand.u32 %v77, 4294901760
    %v2482 = vsub.f32 %v77, %v2481
    %v2483 = vand.u32 %v2482, 4294901760
    %2484 = vmatpush1.msra.mxu0 %v2483
    %2485 = vmatprep.subr.mxu0 0.0
    %v2486 = vand.u32 %v78, 4294901760
    %v2487 = vsub.f32 %v78, %v2486
    %v2488 = vand.u32 %v2487, 4294901760
    %2489 = vmatpush1.msra.mxu0 %v2488
    %2490 = vmatprep.subr.mxu0 0.0
    %v2491 = vand.u32 %v79, 4294901760
    %v2492 = vsub.f32 %v79, %v2491
    %v2493 = vand.u32 %v2492, 4294901760
    %2494 = vmatpush1.msra.mxu0 %v2493
    %2495 = vmatprep.subr.mxu0 0.0
    %v2496 = vand.u32 %v80, 4294901760
    %v2497 = vsub.f32 %v80, %v2496
    %v2498 = vand.u32 %v2497, 4294901760
    %2499 = vmatpush1.msra.mxu0 %v2498
    %2500 = vmatprep.subr.mxu0 0.0
    %v2501 = vand.u32 %v81, 4294901760
    %v2502 = vsub.f32 %v81, %v2501
    %v2503 = vand.u32 %v2502, 4294901760
    %2504 = vmatpush1.msra.mxu0 %v2503
    %2505 = vmatprep.subr.mxu0 0.0
    %v2506 = vand.u32 %v82, 4294901760
    %v2507 = vsub.f32 %v82, %v2506
    %v2508 = vand.u32 %v2507, 4294901760
    %2509 = vmatpush1.msra.mxu0 %v2508
    %2510 = vmatprep.subr.mxu0 0.0
    %v2511 = vand.u32 %v83, 4294901760
    %v2512 = vsub.f32 %v83, %v2511
    %v2513 = vand.u32 %v2512, 4294901760
    %2514 = vmatpush1.msra.mxu0 %v2513
    %2515 = vmatprep.subr.mxu0 0.0
    %v2516 = vand.u32 %v84, 4294901760
    %v2517 = vsub.f32 %v84, %v2516
    %v2518 = vand.u32 %v2517, 4294901760
    %2519 = vmatpush1.msra.mxu0 %v2518
    %2520 = vmatprep.subr.mxu0 0.0
    %v2521 = vand.u32 %v85, 4294901760
    %v2522 = vsub.f32 %v85, %v2521
    %v2523 = vand.u32 %v2522, 4294901760
    %2524 = vmatpush1.msra.mxu0 %v2523
    %2525 = vmatprep.subr.mxu0 0.0
    %v2526 = vand.u32 %v86, 4294901760
    %v2527 = vsub.f32 %v86, %v2526
    %v2528 = vand.u32 %v2527, 4294901760
    %2529 = vmatpush1.msra.mxu0 %v2528
    %2530 = vmatprep.subr.mxu0 0.0
    %v2531 = vand.u32 %v87, 4294901760
    %v2532 = vsub.f32 %v87, %v2531
    %v2533 = vand.u32 %v2532, 4294901760
    %2534 = vmatpush1.msra.mxu0 %v2533
    %2535 = vmatprep.subr.mxu0 0.0
    %v2536 = vand.u32 %v88, 4294901760
    %v2537 = vsub.f32 %v88, %v2536
    %v2538 = vand.u32 %v2537, 4294901760
    %2539 = vmatpush1.msra.mxu0 %v2538
    %2540 = vmatprep.subr.mxu0 0.0
    %v2541 = vand.u32 %v89, 4294901760
    %v2542 = vsub.f32 %v89, %v2541
    %v2543 = vand.u32 %v2542, 4294901760
    %2544 = vmatpush1.msra.mxu0 %v2543
    %2545 = vmatprep.subr.mxu0 0.0
    %v2546 = vand.u32 %v90, 4294901760
    %v2547 = vsub.f32 %v90, %v2546
    %v2548 = vand.u32 %v2547, 4294901760
    %2549 = vmatpush1.msra.mxu0 %v2548
    %2550 = vmatprep.subr.mxu0 0.0
    %2551 = vmatpush1.msra.mxu0 0.0
    %2552 = vmatprep.subr.mxu0 0.0
    %2553 = vmatpush1.msra.mxu0 0.0
    %2554 = vmatprep.subr.mxu0 0.0
    %2555 = vmatpush1.msra.mxu0 0.0
    %2556 = vmatprep.subr.mxu0 0.0
    %2557 = vmatpush1.msra.mxu0 0.0
    %2558 = vmatprep.subr.mxu0 0.0
    %2559 = vmatpush1.msra.mxu0 0.0
    %2560 = vmatprep.subr.mxu0 0.0
    %2561 = vmatpush1.msra.mxu0 0.0
    %2562 = vmatprep.subr.mxu0 0.0
    %2563 = vmatpush1.msra.mxu0 0.0
    %2564 = vmatprep.subr.mxu0 0.0
    %2565 = vmatpush1.msra.mxu0 0.0
    %2566 = vmatprep.subr.mxu0 0.0
    %2567 = vmatpush1.msra.mxu0 0.0
    %2568 = vmatprep.subr.mxu0 0.0
    %2569 = vmatpush1.msra.mxu0 0.0
    %2570 = vmatprep.subr.mxu0 0.0
    %2571 = vmatpush1.msra.mxu0 0.0
    %2572 = vmatprep.subr.mxu0 0.0
    %2573 = vmatpush1.msra.mxu0 0.0
    %2574 = vmatprep.subr.mxu0 0.0
    %2575 = vmatpush1.msra.mxu0 0.0
    %2576 = vmatprep.subr.mxu0 0.0
    %2577 = vmatpush1.msra.mxu0 0.0
    %2578 = vmatprep.subr.mxu0 0.0
    %2579 = vmatpush1.msra.mxu0 0.0
    %2580 = vmatprep.subr.mxu0 0.0
    %2581 = vmatpush1.msra.mxu0 0.0
    %2582 = vmatprep.mubr.f32.mxu0 0.0
    %v2583 = vand.u32 %v1392, 4294901760
    %2584 = vmatmul.mubr.f32.gmra.mrb[0].mxu0 %v2583
    %v2585 = vpop.f32.mrb[0].mxu0
    %v2586 = vadd.f32 %v2467, %v2585
    %v2587 = vpop.f32.mrb[0].mxu0
    %2588 = vdwg.mxu0
    %2589 = vmatprep.subr.mxu0 0.0
    %v2590 = vand.u32 %v75, 4294901760
    %2591 = vmatpush1.msra.mxu0 %v2590
    %2592 = vmatprep.subr.mxu0 0.0
    %v2593 = vand.u32 %v76, 4294901760
    %2594 = vmatpush1.msra.mxu0 %v2593
    %2595 = vmatprep.subr.mxu0 0.0
    %v2596 = vand.u32 %v77, 4294901760
    %2597 = vmatpush1.msra.mxu0 %v2596
    %2598 = vmatprep.subr.mxu0 0.0
    %v2599 = vand.u32 %v78, 4294901760
    %2600 = vmatpush1.msra.mxu0 %v2599
    %2601 = vmatprep.subr.mxu0 0.0
    %v2602 = vand.u32 %v79, 4294901760
    %2603 = vmatpush1.msra.mxu0 %v2602
    %2604 = vmatprep.subr.mxu0 0.0
    %v2605 = vand.u32 %v80, 4294901760
    %2606 = vmatpush1.msra.mxu0 %v2605
    %2607 = vmatprep.subr.mxu0 0.0
    %v2608 = vand.u32 %v81, 4294901760
    %2609 = vmatpush1.msra.mxu0 %v2608
    %2610 = vmatprep.subr.mxu0 0.0
    %v2611 = vand.u32 %v82, 4294901760
    %2612 = vmatpush1.msra.mxu0 %v2611
    %2613 = vmatprep.subr.mxu0 0.0
    %v2614 = vand.u32 %v83, 4294901760
    %2615 = vmatpush1.msra.mxu0 %v2614
    %2616 = vmatprep.subr.mxu0 0.0
    %v2617 = vand.u32 %v84, 4294901760
    %2618 = vmatpush1.msra.mxu0 %v2617
    %2619 = vmatprep.subr.mxu0 0.0
    %v2620 = vand.u32 %v85, 4294901760
    %2621 = vmatpush1.msra.mxu0 %v2620
    %2622 = vmatprep.subr.mxu0 0.0
    %v2623 = vand.u32 %v86, 4294901760
    %2624 = vmatpush1.msra.mxu0 %v2623
    %2625 = vmatprep.subr.mxu0 0.0
    %v2626 = vand.u32 %v87, 4294901760
    %2627 = vmatpush1.msra.mxu0 %v2626
    %2628 = vmatprep.subr.mxu0 0.0
    %v2629 = vand.u32 %v88, 4294901760
    %2630 = vmatpush1.msra.mxu0 %v2629
    %2631 = vmatprep.subr.mxu0 0.0
    %v2632 = vand.u32 %v89, 4294901760
    %2633 = vmatpush1.msra.mxu0 %v2632
    %2634 = vmatprep.subr.mxu0 0.0
    %v2635 = vand.u32 %v90, 4294901760
    %2636 = vmatpush1.msra.mxu0 %v2635
    %2637 = vmatprep.subr.mxu0 0.0
    %2638 = vmatpush1.msra.mxu0 0.0
    %2639 = vmatprep.subr.mxu0 0.0
    %2640 = vmatpush1.msra.mxu0 0.0
    %2641 = vmatprep.subr.mxu0 0.0
    %2642 = vmatpush1.msra.mxu0 0.0
    %2643 = vmatprep.subr.mxu0 0.0
    %2644 = vmatpush1.msra.mxu0 0.0
    %2645 = vmatprep.subr.mxu0 0.0
    %2646 = vmatpush1.msra.mxu0 0.0
    %2647 = vmatprep.subr.mxu0 0.0
    %2648 = vmatpush1.msra.mxu0 0.0
    %2649 = vmatprep.subr.mxu0 0.0
    %2650 = vmatpush1.msra.mxu0 0.0
    %2651 = vmatprep.subr.mxu0 0.0
    %2652 = vmatpush1.msra.mxu0 0.0
    %2653 = vmatprep.subr.mxu0 0.0
    %2654 = vmatpush1.msra.mxu0 0.0
    %2655 = vmatprep.subr.mxu0 0.0
    %2656 = vmatpush1.msra.mxu0 0.0
    %2657 = vmatprep.subr.mxu0 0.0
    %2658 = vmatpush1.msra.mxu0 0.0
    %2659 = vmatprep.subr.mxu0 0.0
    %2660 = vmatpush1.msra.mxu0 0.0
    %2661 = vmatprep.subr.mxu0 0.0
    %2662 = vmatpush1.msra.mxu0 0.0
    %2663 = vmatprep.subr.mxu0 0.0
    %2664 = vmatpush1.msra.mxu0 0.0
    %2665 = vmatprep.subr.mxu0 0.0
    %2666 = vmatpush1.msra.mxu0 0.0
    %2667 = vmatprep.subr.mxu0 0.0
    %2668 = vmatpush1.msra.mxu0 0.0
    %2669 = vmatprep.mubr.f32.mxu0 0.0
    %v2670 = vand.u32 %v1392, 4294901760
    %2671 = vmatmul.mubr.f32.gmra.mrb[0].mxu0 %v2670
    %v2672 = vpop.f32.mrb[0].mxu0
    %v2673 = vadd.f32 %v2586, %v2672
    %v2674 = vpop.f32.mrb[0].mxu0
    %2675 = vdwg.mxu0
    %2676 = vst [vmem:[#allocation10 + $0x8] sm:$0xff] %v2673
    // Predicated region
    $region34: #{tpu_custom_call.1} parent=1 // pred_check
      _
    $region35: #{tpu_custom_call.1} parent=1 // pred_check_branch
      %2678 = sbr.rel (0) target = $region37
    $region36: #{tpu_custom_call.1} parent=1 // pred_region
      %s2680 = ssub.s32 256, 256
      %2681 = vsyncadd [#allocation4], %s2680
      %s2683 = sshll.u32 [#allocation10], 4
      %s2684 = int_to_ptr.vmem [resolvable:$true] %s2683
      %2686 = dma.vmem_to_hbm [thread:$0]  %s2684, 256, %s4, [#allocation4]
    $region37: #{tpu_custom_call.1} parent=1 // pred_fallthru
      _
    // Predicated region
    $region38: #{tpu_custom_call.1} parent=1 // pred_check
      _
    $region39: #{tpu_custom_call.1} parent=1 // pred_check_branch
      %2688 = sbr.rel (0) target = $region41
    $region40: #{tpu_custom_call.1} parent=1 // pred_region
      %2689 = dma.done [#allocation4], 256
    $region41: #{tpu_custom_call.1} parent=1 // pred_fallthru
      _
    %2690 = vsyncpa [#allocation3], 1
    %2691 = vsyncpa [#allocation6], 1
    %2692 = vsyncpa [#allocation9], 1
    %2693 = vsyncpa [#allocation4], 1

</llo_original>
